<compile_context>
chip_gen: v7x
topology: tpu7x:2x2x1
jax: 0.10.0
libtpu: 0.0.40
codegen_flags: <defaults>
</compile_context>

<pallas_src>
import math
import functools

import jax
import jax.numpy as jnp
from jax.experimental import pallas as pl
from jax.experimental.pallas import tpu as pltpu

# ---- model hyper-parameters (small, consistent with the module) -------------
B = 2            # batch
S = 8            # sequence length (<= max_seq_len)
H = 32           # hidden_size
NUM_HEADS = 4
HEAD_DIM = H // NUM_HEADS          # attention_head_size
CAUSAL_BIAS = -10000.0             # self.causal_mask_bias


def _mha_kernel(x_ref, wqkv_ref, bqkv_ref, wd_ref, bd_ref, o_ref,
                *, batch, seq, num_heads, head_dim):
    """Single grid step: whole (B*S, H) forward pass in VMEM."""
    hidden = num_heads * head_dim

    x = x_ref[...]                       # (B*S, H)

    # Fused QKV projection for every (batch, token) row at once: ONE MXU matmul
    # with N = 3H, instead of per-head projections.
    qkv = jnp.dot(x, wqkv_ref[...],
                  preferred_element_type=jnp.float32) + bqkv_ref[...]   # (B*S, 3H)

    # Causal mask, built ONCE per invocation. Replacement semantics to match
    # torch.where(causal_mask, scores, causal_mask_bias).
    row = jax.lax.broadcasted_iota(jnp.int32, (seq, seq), 0)
    col = jax.lax.broadcasted_iota(jnp.int32, (seq, seq), 1)
    keep = (row >= col)[None, :, :]      # (1, S, S) -> broadcast over batch

    inv_sqrt_d = jnp.float32(1.0 / math.sqrt(head_dim))

    ctx_heads = []
    for h in range(num_heads):           # static unrolled loop over heads only
        # Original fused-QKV column layout: per-head contiguous [q_h | k_h | v_h].
        base = h * 3 * head_dim
        q = qkv[:, base:base + head_dim].reshape(batch, seq, head_dim)
        k = qkv[:, base + head_dim:base + 2 * head_dim].reshape(batch, seq, head_dim)
        v = qkv[:, base + 2 * head_dim:base + 3 * head_dim].reshape(batch, seq, head_dim)

        # Batched over B; contract last-vs-last => no k.T (no XLU transpose).
        s = jnp.einsum('bqd,bkd->bqk', q, k,
                       preferred_element_type=jnp.float32) * inv_sqrt_d
        s = jnp.where(keep, s, jnp.float32(CAUSAL_BIAS))

        # softmax(dim=-1), all in f32, exact normalization.
        s = s - jnp.max(s, axis=-1, keepdims=True)
        p = jnp.exp(s)
        p = p / jnp.sum(p, axis=-1, keepdims=True)

        ctx_heads.append(jnp.einsum('bqk,bkd->bqd', p, v,
                                    preferred_element_type=jnp.float32))  # (B,S,hd)

    # Reassemble heads once on the lane axis, then a SINGLE K=H output matmul
    # (un-folded projection: full MXU contraction depth, no per-head adds).
    ctx = jnp.concatenate(ctx_heads, axis=-1)            # (B, S, H)
    ctx = ctx.reshape(batch * seq, hidden)               # (B*S, H)
    out = jnp.dot(ctx, wd_ref[...],
                  preferred_element_type=jnp.float32) + bd_ref[...]
    o_ref[...] = out.astype(o_ref.dtype)


def mha_1d_pallas(x, w_qkv, b_qkv, w_dense, b_dense):
    """x: (B, S, H) float32; returns (B, S, H) float32.

    Weights are used in their ORIGINAL module layout (fused per-head
    [q_h|k_h|v_h] columns) -- no host-side de-interleave on the call path.
    """
    Bn, Sn, Hn = x.shape
    nh, hd = NUM_HEADS, HEAD_DIM

    # Collapse batch into rows: single fused grid step.
    x2 = x.reshape(Bn * Sn, Hn)
    b_qkv2 = b_qkv.reshape(1, 3 * Hn)
    b_dense2 = b_dense.reshape(1, Hn)

    kernel = functools.partial(_mha_kernel, batch=Bn, seq=Sn,
                               num_heads=nh, head_dim=hd)

    out2 = pl.pallas_call(
        kernel,
        out_shape=jax.ShapeDtypeStruct((Bn * Sn, Hn), x.dtype),
        grid_spec=pltpu.PrefetchScalarGridSpec(
            num_scalar_prefetch=0,
            grid=(1,),
            in_specs=[
                pl.BlockSpec((Bn * Sn, Hn), lambda i: (0, 0)),     # x (fused rows)
                pl.BlockSpec((Hn, 3 * Hn), lambda i: (0, 0)),      # W_qkv (original layout)
                pl.BlockSpec((1, 3 * Hn), lambda i: (0, 0)),       # b_qkv
                pl.BlockSpec((Hn, Hn), lambda i: (0, 0)),          # W_dense
                pl.BlockSpec((1, Hn), lambda i: (0, 0)),           # b_dense
            ],
            out_specs=pl.BlockSpec((Bn * Sn, Hn), lambda i: (0, 0)),
        ),
        compiler_params=pltpu.CompilerParams(
            dimension_semantics=("arbitrary",)),
    )(x2, w_qkv, b_qkv2, w_dense, b_dense2)

    return out2.reshape(Bn, Sn, Hn)


def mha_1d_reference(x, w_qkv, b_qkv, w_dense, b_dense):
    """Pure-JAX reference mirroring the PyTorch forward exactly
    (uses the original interleaved fused QKV weight)."""
    Bn, Sn, Hn = x.shape
    qkv = x @ w_qkv + b_qkv                                       # (B, S, 3H)
    qkv = qkv.reshape(Bn, Sn, NUM_HEADS, 3 * HEAD_DIM)
    qkv = jnp.transpose(qkv, (0, 2, 1, 3))                        # (B, nh, S, 3hd)
    q, k, v = jnp.split(qkv, 3, axis=-1)
    scores = jnp.einsum("bhqd,bhkd->bhqk", q, k) / math.sqrt(HEAD_DIM)
    causal = jnp.tril(jnp.ones((Sn, Sn), dtype=bool))[None, None]
    scores = jnp.where(causal, scores, jnp.float32(CAUSAL_BIAS))
    attn = jax.nn.softmax(scores, axis=-1)
    ctx = jnp.einsum("bhqk,bhkd->bhqd", attn, v)
    ctx = jnp.transpose(ctx, (0, 2, 1, 3)).reshape(Bn, Sn, Hn)
    return ctx @ w_dense + b_dense


if __name__ == "__main__":
    key = jax.random.PRNGKey(0)
    kx, kw1, kb1, kw2, kb2 = jax.random.split(key, 5)

    x = jax.random.normal(kx, (B, S, H), dtype=jnp.float32)
    # Deterministic synthetic parameters (shapes from Linear1D_Col / Linear1D_Row).
    w_qkv = jax.random.normal(kw1, (H, 3 * H), dtype=jnp.float32) * 0.02
    b_qkv = jax.random.normal(kb1, (3 * H,), dtype=jnp.float32) * 0.02
    w_dense = jax.random.normal(kw2, (H, H), dtype=jnp.float32) * 0.02
    b_dense = jax.random.normal(kb2, (H,), dtype=jnp.float32) * 0.02

    out = mha_1d_pallas(x, w_qkv, b_qkv, w_dense, b_dense)
    out = jax.block_until_ready(out)

    ref = mha_1d_reference(x, w_qkv, b_qkv, w_dense, b_dense)
    assert out.shape == (B, S, H)
    assert jnp.allclose(out, ref, rtol=1e-3, atol=1e-3)

    print("KERNEL_OK")
</pallas_src>

<mosaic_0001>
module attributes {stable_mosaic.version = 11 : i64} {
  func.func @_mha_kernel(%arg0: i32, %arg1: memref<16x32xf32, #tpu.memory_space<vmem>>, %arg2: memref<32x96xf32, #tpu.memory_space<vmem>>, %arg3: memref<1x96xf32, #tpu.memory_space<vmem>>, %arg4: memref<32x32xf32, #tpu.memory_space<vmem>>, %arg5: memref<1x32xf32, #tpu.memory_space<vmem>>, %arg6: memref<16x32xf32, #tpu.memory_space<vmem>>) attributes {dimension_semantics = [#tpu.dimension_semantics<arbitrary>], iteration_bounds = array<i64: 1>, scalar_prefetch = 0 : i64, scratch_operands = 0 : i64, tpu.core_type = #tpu.core_type<tc>, window_params = [{pipeline_mode = #tpu.pipeline_mode<synchronous>, transform_indices = @transform_0, window_bounds = array<i64: 16, 32>}, {pipeline_mode = #tpu.pipeline_mode<synchronous>, transform_indices = @transform_1, window_bounds = array<i64: 32, 96>}, {pipeline_mode = #tpu.pipeline_mode<synchronous>, transform_indices = @transform_2, window_bounds = array<i64: 1, 96>}, {pipeline_mode = #tpu.pipeline_mode<synchronous>, transform_indices = @transform_3, window_bounds = array<i64: 32, 32>}, {pipeline_mode = #tpu.pipeline_mode<synchronous>, transform_indices = @transform_4, window_bounds = array<i64: 1, 32>}, {pipeline_mode = #tpu.pipeline_mode<synchronous>, transform_indices = @transform_5, window_bounds = array<i64: 16, 32>}]} {
    %c0 = arith.constant 0 : index
    %c0_0 = arith.constant 0 : index
    %0 = vector.load %arg1[%c0, %c0_0] : memref<16x32xf32, #tpu.memory_space<vmem>>, vector<16x32xf32>
    %c0_1 = arith.constant 0 : index
    %c0_2 = arith.constant 0 : index
    %1 = vector.load %arg2[%c0_1, %c0_2] : memref<32x96xf32, #tpu.memory_space<vmem>>, vector<32x96xf32>
    %cst = arith.constant dense<0.000000e+00> : vector<16x96xf32>
    %2 = tpu.matmul %0, %1, %cst {dimension_numbers = #tpu.dot_dimension_numbers<[1], [0], [0], [1], [0, 0, 1, 1], [], []>} : vector<16x32xf32>, vector<32x96xf32>, vector<16x96xf32> -> vector<16x96xf32>
    %c0_3 = arith.constant 0 : index
    %c0_4 = arith.constant 0 : index
    %3 = vector.load %arg3[%c0_3, %c0_4] : memref<1x96xf32, #tpu.memory_space<vmem>>, vector<1x96xf32>
    %4 = vector.broadcast %3 : vector<1x96xf32> to vector<16x96xf32>
    %5 = arith.addf %2, %4 : vector<16x96xf32>
    %6 = tpu.iota {dimensions = array<i32: 0>} : vector<8x8xi32>
    %7 = tpu.iota {dimensions = array<i32: 1>} : vector<8x8xi32>
    %8 = arith.cmpi sge, %6, %7 : vector<8x8xi32>
    %9 = vector.shape_cast %8 : vector<8x8xi1> to vector<1x8x8xi1>
    %10 = vector.extract_strided_slice %5 {offsets = [0, 0], sizes = [16, 8], strides = [1, 1]} : vector<16x96xf32> to vector<16x8xf32>
    %11 = vector.shape_cast %10 : vector<16x8xf32> to vector<2x8x8xf32>
    %12 = vector.extract_strided_slice %5 {offsets = [0, 8], sizes = [16, 8], strides = [1, 1]} : vector<16x96xf32> to vector<16x8xf32>
    %13 = vector.shape_cast %12 : vector<16x8xf32> to vector<2x8x8xf32>
    %14 = vector.extract_strided_slice %5 {offsets = [0, 16], sizes = [16, 8], strides = [1, 1]} : vector<16x96xf32> to vector<16x8xf32>
    %15 = vector.shape_cast %14 : vector<16x8xf32> to vector<2x8x8xf32>
    "tpu.trace_start"() <{level = 10 : i32, message = "bqd,bkd->bqk"}> : () -> ()
    %cst_5 = arith.constant dense<0.000000e+00> : vector<2x8x8xf32>
    %16 = tpu.matmul %11, %13, %cst_5 {dimension_numbers = #tpu.dot_dimension_numbers<[2], [2], [1], [1], [0, 0, 0, 1, 1, 1], [0], [0]>} : vector<2x8x8xf32>, vector<2x8x8xf32>, vector<2x8x8xf32> -> vector<2x8x8xf32>
    "tpu.trace_stop"() : () -> ()
    %cst_6 = arith.constant 0.353553385 : f32
    %17 = vector.broadcast %cst_6 : f32 to vector<2x8x8xf32>
    %18 = arith.mulf %16, %17 : vector<2x8x8xf32>
    %cst_7 = arith.constant -1.000000e+04 : f32
    %19 = vector.shape_cast %9 : vector<1x8x8xi1> to vector<1x8x8xi1>
    %20 = vector.broadcast %19 : vector<1x8x8xi1> to vector<2x8x8xi1>
    %21 = vector.broadcast %cst_7 : f32 to vector<2x8x8xf32>
    %22 = arith.select %20, %18, %21 : vector<2x8x8xi1>, vector<2x8x8xf32>
    %cst_8 = arith.constant dense<0xFF800000> : vector<2x8xf32>
    %23 = vector.multi_reduction <maximumf>, %22, %cst_8 [2] : vector<2x8x8xf32> to vector<2x8xf32>
    %24 = vector.shape_cast %23 : vector<2x8xf32> to vector<2x8x1xf32>
    %25 = vector.broadcast %24 : vector<2x8x1xf32> to vector<2x8x8xf32>
    %26 = arith.subf %22, %25 : vector<2x8x8xf32>
    %27 = math.exp %26 : vector<2x8x8xf32>
    %cst_9 = arith.constant dense<0.000000e+00> : vector<2x8xf32>
    %28 = vector.multi_reduction <add>, %27, %cst_9 [2] : vector<2x8x8xf32> to vector<2x8xf32>
    %29 = vector.shape_cast %28 : vector<2x8xf32> to vector<2x8x1xf32>
    %30 = vector.broadcast %29 : vector<2x8x1xf32> to vector<2x8x8xf32>
    %31 = arith.divf %27, %30 : vector<2x8x8xf32>
    "tpu.trace_start"() <{level = 10 : i32, message = "bqk,bkd->bqd"}> : () -> ()
    %cst_10 = arith.constant dense<0.000000e+00> : vector<2x8x8xf32>
    %32 = tpu.matmul %31, %15, %cst_10 {dimension_numbers = #tpu.dot_dimension_numbers<[2], [1], [1], [2], [0, 0, 0, 1, 1, 2], [0], [0]>} : vector<2x8x8xf32>, vector<2x8x8xf32>, vector<2x8x8xf32> -> vector<2x8x8xf32>
    "tpu.trace_stop"() : () -> ()
    %33 = vector.extract_strided_slice %5 {offsets = [0, 24], sizes = [16, 8], strides = [1, 1]} : vector<16x96xf32> to vector<16x8xf32>
    %34 = vector.shape_cast %33 : vector<16x8xf32> to vector<2x8x8xf32>
    %35 = vector.extract_strided_slice %5 {offsets = [0, 32], sizes = [16, 8], strides = [1, 1]} : vector<16x96xf32> to vector<16x8xf32>
    %36 = vector.shape_cast %35 : vector<16x8xf32> to vector<2x8x8xf32>
    %37 = vector.extract_strided_slice %5 {offsets = [0, 40], sizes = [16, 8], strides = [1, 1]} : vector<16x96xf32> to vector<16x8xf32>
    %38 = vector.shape_cast %37 : vector<16x8xf32> to vector<2x8x8xf32>
    "tpu.trace_start"() <{level = 10 : i32, message = "bqd,bkd->bqk"}> : () -> ()
    %cst_11 = arith.constant dense<0.000000e+00> : vector<2x8x8xf32>
    %39 = tpu.matmul %34, %36, %cst_11 {dimension_numbers = #tpu.dot_dimension_numbers<[2], [2], [1], [1], [0, 0, 0, 1, 1, 1], [0], [0]>} : vector<2x8x8xf32>, vector<2x8x8xf32>, vector<2x8x8xf32> -> vector<2x8x8xf32>
    "tpu.trace_stop"() : () -> ()
    %cst_12 = arith.constant 0.353553385 : f32
    %40 = vector.broadcast %cst_12 : f32 to vector<2x8x8xf32>
    %41 = arith.mulf %39, %40 : vector<2x8x8xf32>
    %cst_13 = arith.constant -1.000000e+04 : f32
    %42 = vector.shape_cast %9 : vector<1x8x8xi1> to vector<1x8x8xi1>
    %43 = vector.broadcast %42 : vector<1x8x8xi1> to vector<2x8x8xi1>
    %44 = vector.broadcast %cst_13 : f32 to vector<2x8x8xf32>
    %45 = arith.select %43, %41, %44 : vector<2x8x8xi1>, vector<2x8x8xf32>
    %cst_14 = arith.constant dense<0xFF800000> : vector<2x8xf32>
    %46 = vector.multi_reduction <maximumf>, %45, %cst_14 [2] : vector<2x8x8xf32> to vector<2x8xf32>
    %47 = vector.shape_cast %46 : vector<2x8xf32> to vector<2x8x1xf32>
    %48 = vector.broadcast %47 : vector<2x8x1xf32> to vector<2x8x8xf32>
    %49 = arith.subf %45, %48 : vector<2x8x8xf32>
    %50 = math.exp %49 : vector<2x8x8xf32>
    %cst_15 = arith.constant dense<0.000000e+00> : vector<2x8xf32>
    %51 = vector.multi_reduction <add>, %50, %cst_15 [2] : vector<2x8x8xf32> to vector<2x8xf32>
    %52 = vector.shape_cast %51 : vector<2x8xf32> to vector<2x8x1xf32>
    %53 = vector.broadcast %52 : vector<2x8x1xf32> to vector<2x8x8xf32>
    %54 = arith.divf %50, %53 : vector<2x8x8xf32>
    "tpu.trace_start"() <{level = 10 : i32, message = "bqk,bkd->bqd"}> : () -> ()
    %cst_16 = arith.constant dense<0.000000e+00> : vector<2x8x8xf32>
    %55 = tpu.matmul %54, %38, %cst_16 {dimension_numbers = #tpu.dot_dimension_numbers<[2], [1], [1], [2], [0, 0, 0, 1, 1, 2], [0], [0]>} : vector<2x8x8xf32>, vector<2x8x8xf32>, vector<2x8x8xf32> -> vector<2x8x8xf32>
    "tpu.trace_stop"() : () -> ()
    %56 = vector.extract_strided_slice %5 {offsets = [0, 48], sizes = [16, 8], strides = [1, 1]} : vector<16x96xf32> to vector<16x8xf32>
    %57 = vector.shape_cast %56 : vector<16x8xf32> to vector<2x8x8xf32>
    %58 = vector.extract_strided_slice %5 {offsets = [0, 56], sizes = [16, 8], strides = [1, 1]} : vector<16x96xf32> to vector<16x8xf32>
    %59 = vector.shape_cast %58 : vector<16x8xf32> to vector<2x8x8xf32>
    %60 = vector.extract_strided_slice %5 {offsets = [0, 64], sizes = [16, 8], strides = [1, 1]} : vector<16x96xf32> to vector<16x8xf32>
    %61 = vector.shape_cast %60 : vector<16x8xf32> to vector<2x8x8xf32>
    "tpu.trace_start"() <{level = 10 : i32, message = "bqd,bkd->bqk"}> : () -> ()
    %cst_17 = arith.constant dense<0.000000e+00> : vector<2x8x8xf32>
    %62 = tpu.matmul %57, %59, %cst_17 {dimension_numbers = #tpu.dot_dimension_numbers<[2], [2], [1], [1], [0, 0, 0, 1, 1, 1], [0], [0]>} : vector<2x8x8xf32>, vector<2x8x8xf32>, vector<2x8x8xf32> -> vector<2x8x8xf32>
    "tpu.trace_stop"() : () -> ()
    %cst_18 = arith.constant 0.353553385 : f32
    %63 = vector.broadcast %cst_18 : f32 to vector<2x8x8xf32>
    %64 = arith.mulf %62, %63 : vector<2x8x8xf32>
    %cst_19 = arith.constant -1.000000e+04 : f32
    %65 = vector.shape_cast %9 : vector<1x8x8xi1> to vector<1x8x8xi1>
    %66 = vector.broadcast %65 : vector<1x8x8xi1> to vector<2x8x8xi1>
    %67 = vector.broadcast %cst_19 : f32 to vector<2x8x8xf32>
    %68 = arith.select %66, %64, %67 : vector<2x8x8xi1>, vector<2x8x8xf32>
    %cst_20 = arith.constant dense<0xFF800000> : vector<2x8xf32>
    %69 = vector.multi_reduction <maximumf>, %68, %cst_20 [2] : vector<2x8x8xf32> to vector<2x8xf32>
    %70 = vector.shape_cast %69 : vector<2x8xf32> to vector<2x8x1xf32>
    %71 = vector.broadcast %70 : vector<2x8x1xf32> to vector<2x8x8xf32>
    %72 = arith.subf %68, %71 : vector<2x8x8xf32>
    %73 = math.exp %72 : vector<2x8x8xf32>
    %cst_21 = arith.constant dense<0.000000e+00> : vector<2x8xf32>
    %74 = vector.multi_reduction <add>, %73, %cst_21 [2] : vector<2x8x8xf32> to vector<2x8xf32>
    %75 = vector.shape_cast %74 : vector<2x8xf32> to vector<2x8x1xf32>
    %76 = vector.broadcast %75 : vector<2x8x1xf32> to vector<2x8x8xf32>
    %77 = arith.divf %73, %76 : vector<2x8x8xf32>
    "tpu.trace_start"() <{level = 10 : i32, message = "bqk,bkd->bqd"}> : () -> ()
    %cst_22 = arith.constant dense<0.000000e+00> : vector<2x8x8xf32>
    %78 = tpu.matmul %77, %61, %cst_22 {dimension_numbers = #tpu.dot_dimension_numbers<[2], [1], [1], [2], [0, 0, 0, 1, 1, 2], [0], [0]>} : vector<2x8x8xf32>, vector<2x8x8xf32>, vector<2x8x8xf32> -> vector<2x8x8xf32>
    "tpu.trace_stop"() : () -> ()
    %79 = vector.extract_strided_slice %5 {offsets = [0, 72], sizes = [16, 8], strides = [1, 1]} : vector<16x96xf32> to vector<16x8xf32>
    %80 = vector.shape_cast %79 : vector<16x8xf32> to vector<2x8x8xf32>
    %81 = vector.extract_strided_slice %5 {offsets = [0, 80], sizes = [16, 8], strides = [1, 1]} : vector<16x96xf32> to vector<16x8xf32>
    %82 = vector.shape_cast %81 : vector<16x8xf32> to vector<2x8x8xf32>
    %83 = vector.extract_strided_slice %5 {offsets = [0, 88], sizes = [16, 8], strides = [1, 1]} : vector<16x96xf32> to vector<16x8xf32>
    %84 = vector.shape_cast %83 : vector<16x8xf32> to vector<2x8x8xf32>
    "tpu.trace_start"() <{level = 10 : i32, message = "bqd,bkd->bqk"}> : () -> ()
    %cst_23 = arith.constant dense<0.000000e+00> : vector<2x8x8xf32>
    %85 = tpu.matmul %80, %82, %cst_23 {dimension_numbers = #tpu.dot_dimension_numbers<[2], [2], [1], [1], [0, 0, 0, 1, 1, 1], [0], [0]>} : vector<2x8x8xf32>, vector<2x8x8xf32>, vector<2x8x8xf32> -> vector<2x8x8xf32>
    "tpu.trace_stop"() : () -> ()
    %cst_24 = arith.constant 0.353553385 : f32
    %86 = vector.broadcast %cst_24 : f32 to vector<2x8x8xf32>
    %87 = arith.mulf %85, %86 : vector<2x8x8xf32>
    %cst_25 = arith.constant -1.000000e+04 : f32
    %88 = vector.shape_cast %9 : vector<1x8x8xi1> to vector<1x8x8xi1>
    %89 = vector.broadcast %88 : vector<1x8x8xi1> to vector<2x8x8xi1>
    %90 = vector.broadcast %cst_25 : f32 to vector<2x8x8xf32>
    %91 = arith.select %89, %87, %90 : vector<2x8x8xi1>, vector<2x8x8xf32>
    %cst_26 = arith.constant dense<0xFF800000> : vector<2x8xf32>
    %92 = vector.multi_reduction <maximumf>, %91, %cst_26 [2] : vector<2x8x8xf32> to vector<2x8xf32>
    %93 = vector.shape_cast %92 : vector<2x8xf32> to vector<2x8x1xf32>
    %94 = vector.broadcast %93 : vector<2x8x1xf32> to vector<2x8x8xf32>
    %95 = arith.subf %91, %94 : vector<2x8x8xf32>
    %96 = math.exp %95 : vector<2x8x8xf32>
    %cst_27 = arith.constant dense<0.000000e+00> : vector<2x8xf32>
    %97 = vector.multi_reduction <add>, %96, %cst_27 [2] : vector<2x8x8xf32> to vector<2x8xf32>
    %98 = vector.shape_cast %97 : vector<2x8xf32> to vector<2x8x1xf32>
    %99 = vector.broadcast %98 : vector<2x8x1xf32> to vector<2x8x8xf32>
    %100 = arith.divf %96, %99 : vector<2x8x8xf32>
    "tpu.trace_start"() <{level = 10 : i32, message = "bqk,bkd->bqd"}> : () -> ()
    %cst_28 = arith.constant dense<0.000000e+00> : vector<2x8x8xf32>
    %101 = tpu.matmul %100, %84, %cst_28 {dimension_numbers = #tpu.dot_dimension_numbers<[2], [1], [1], [2], [0, 0, 0, 1, 1, 2], [0], [0]>} : vector<2x8x8xf32>, vector<2x8x8xf32>, vector<2x8x8xf32> -> vector<2x8x8xf32>
    "tpu.trace_stop"() : () -> ()
    %102 = tpu.concatenate %32, %55, %78, %101 in 2 : vector<2x8x8xf32>, vector<2x8x8xf32>, vector<2x8x8xf32>, vector<2x8x8xf32> -> vector<2x8x32xf32>
    %103 = vector.shape_cast %102 : vector<2x8x32xf32> to vector<16x32xf32>
    %c0_29 = arith.constant 0 : index
    %c0_30 = arith.constant 0 : index
    %104 = vector.load %arg4[%c0_29, %c0_30] : memref<32x32xf32, #tpu.memory_space<vmem>>, vector<32x32xf32>
    %cst_31 = arith.constant dense<0.000000e+00> : vector<16x32xf32>
    %105 = tpu.matmul %103, %104, %cst_31 {dimension_numbers = #tpu.dot_dimension_numbers<[1], [0], [0], [1], [0, 0, 1, 1], [], []>} : vector<16x32xf32>, vector<32x32xf32>, vector<16x32xf32> -> vector<16x32xf32>
    %c0_32 = arith.constant 0 : index
    %c0_33 = arith.constant 0 : index
    %106 = vector.load %arg5[%c0_32, %c0_33] : memref<1x32xf32, #tpu.memory_space<vmem>>, vector<1x32xf32>
    %107 = vector.broadcast %106 : vector<1x32xf32> to vector<16x32xf32>
    %108 = arith.addf %105, %107 : vector<16x32xf32>
    %c0_34 = arith.constant 0 : index
    %c0_35 = arith.constant 0 : index
    %109 = vector.load %arg6[%c0_34, %c0_35] : memref<16x32xf32, #tpu.memory_space<vmem>>, vector<16x32xf32>
    tpu.vector_store %arg6[%c0_34, %c0_35], %108 {strides = array<i32>} : memref<16x32xf32, #tpu.memory_space<vmem>>, vector<16x32xf32>,
    return
  }
  func.func @transform_0(%arg0: i32) -> (i32, i32) {
    %c0_i32 = arith.constant 0 : i32
    %c0_i32_0 = arith.constant 0 : i32
    %c0_i32_1 = arith.constant 0 : i32
    return %c0_i32, %c0_i32_0 : i32, i32
  }
  func.func @transform_1(%arg0: i32) -> (i32, i32) {
    %c0_i32 = arith.constant 0 : i32
    %c0_i32_0 = arith.constant 0 : i32
    %c0_i32_1 = arith.constant 0 : i32
    return %c0_i32, %c0_i32_0 : i32, i32
  }
  func.func @transform_2(%arg0: i32) -> (i32, i32) {
    %c0_i32 = arith.constant 0 : i32
    %c0_i32_0 = arith.constant 0 : i32
    %c0_i32_1 = arith.constant 0 : i32
    return %c0_i32, %c0_i32_0 : i32, i32
  }
  func.func @transform_3(%arg0: i32) -> (i32, i32) {
    %c0_i32 = arith.constant 0 : i32
    %c0_i32_0 = arith.constant 0 : i32
    %c0_i32_1 = arith.constant 0 : i32
    return %c0_i32, %c0_i32_0 : i32, i32
  }
  func.func @transform_4(%arg0: i32) -> (i32, i32) {
    %c0_i32 = arith.constant 0 : i32
    %c0_i32_0 = arith.constant 0 : i32
    %c0_i32_1 = arith.constant 0 : i32
    return %c0_i32, %c0_i32_0 : i32, i32
  }
  func.func @transform_5(%arg0: i32) -> (i32, i32) {
    %c0_i32 = arith.constant 0 : i32
    %c0_i32_0 = arith.constant 0 : i32
    %c0_i32_1 = arith.constant 0 : i32
    return %c0_i32, %c0_i32_0 : i32, i32
  }
}

</mosaic_0001>

<llo_original>
// kernel: tpu_custom_call.1
$region0: #{tpu_custom_call.1}
  #allocation0 [shape = 'u32[]', space=smem, size = 0x4, offset = 0x4, fixed_abs, tag = 'smem constant byte address 0x4 - core index']
  #allocation1 [shape = 'u32[144,128]{1,0:T(1,128)}', space=vmem, size = 0x12000, scoped, tag = 'internal scratch']
  %s0 = inlined_call_operand.hbm [shape: f32[16,32], index: 0, kind: input, shape index: {}]
  %s1 = inlined_call_operand.hbm [shape: f32[32,96], index: 1, kind: input, shape index: {}]
  %s2 = inlined_call_operand.vmem [shape: f32[1,96], index: 2, kind: input, shape index: {}]
  %s3 = inlined_call_operand.hbm [shape: f32[32,32], index: 3, kind: input, shape index: {}]
  %s4 = inlined_call_operand.vmem [shape: f32[1,32], index: 4, kind: input, shape index: {}]
  %s5 = inlined_call_operand.hbm [shape: f32[16,32], index: 5, kind: output, shape index: {}]
  %s6 = sld [smem:[#allocation0]]
  $region42: #{tpu_custom_call.1} parent=0
    _
  %s8 = ssub.s32 1, %s6
  %s9 = scalar_select 0, %s8, %s6
  $region1: #{tpu_custom_call.1} parent=0
    #allocation2 [shape = 'u8[8192]{0}', space=vmem, size = 0x2000, scoped, tag = 'input window, operand 0, single buffered']
    #allocation3 [shape = 's32[1]{0}', space=sflag, size = 0x4, scoped, tag = 'scoped memory for tpu_custom_call.1']
    #allocation4 [shape = 's32[1]{0}', space=sflag, size = 0x4, scoped, tag = 'scoped memory for tpu_custom_call.1']
    #allocation5 [shape = 'u8[16384]{0}', space=vmem, size = 0x4000, scoped, tag = 'input window, operand 1, single buffered']
    #allocation6 [shape = 's32[1]{0}', space=sflag, size = 0x4, scoped, tag = 'scoped memory for tpu_custom_call.1']
    #allocation7 [shape = 'u8[16384]{0}', space=vmem, size = 0x4000, scoped, tag = 'input window, operand 3, single buffered']
    #allocation8 [shape = 'u8[8192]{0}', space=vmem, size = 0x2000, scoped, tag = 'output window, operand 0, single buffered']
    %10 = vsyncpa [#allocation3], 0
    %11 = vsyncpa [#allocation6], 0
    %12 = vsyncpa [#allocation4], 0
    // Predicated region
    $region2: #{tpu_custom_call.1} parent=1 // pred_check
      _
    $region3: #{tpu_custom_call.1} parent=1 // pred_check_branch
      %14 = sbr.rel (0) target = $region5
    $region4: #{tpu_custom_call.1} parent=1 // pred_region
      %s16 = ssub.s32 256, 256
      %17 = vsyncadd [#allocation3], %s16
      %s18 = sshll.u32 [#allocation2], 4
      %s19 = int_to_ptr.vmem [resolvable:$true] %s18
      %24 = dma.hbm_to_vmem [thread:$0]  %s0, 256, %s19, [#allocation3], 128, 128, 8
    $region5: #{tpu_custom_call.1} parent=1 // pred_fallthru
      _
    // Predicated region
    $region6: #{tpu_custom_call.1} parent=1 // pred_check
      _
    $region7: #{tpu_custom_call.1} parent=1 // pred_check_branch
      %26 = sbr.rel (0) target = $region9
    $region8: #{tpu_custom_call.1} parent=1 // pred_region
      %s28 = ssub.s32 512, 512
      %29 = vsyncadd [#allocation6], %s28
      %s30 = sshll.u32 [#allocation5], 4
      %s31 = int_to_ptr.vmem [resolvable:$true] %s30
      %36 = dma.hbm_to_vmem [thread:$0]  %s1, 512, %s31, [#allocation6], 128, 128, 8
    $region9: #{tpu_custom_call.1} parent=1 // pred_fallthru
      _
    // Predicated region
    $region10: #{tpu_custom_call.1} parent=1 // pred_check
      _
    $region11: #{tpu_custom_call.1} parent=1 // pred_check_branch
      %38 = sbr.rel (0) target = $region13
    $region12: #{tpu_custom_call.1} parent=1 // pred_region
      _
    $region13: #{tpu_custom_call.1} parent=1 // pred_fallthru
      _
    // Predicated region
    $region14: #{tpu_custom_call.1} parent=1 // pred_check
      _
    $region15: #{tpu_custom_call.1} parent=1 // pred_check_branch
      %40 = sbr.rel (0) target = $region17
    $region16: #{tpu_custom_call.1} parent=1 // pred_region
      %s42 = ssub.s32 512, 512
      %43 = vsyncadd [#allocation6], %s42
      %s44 = sshll.u32 [#allocation7], 4
      %s45 = int_to_ptr.vmem [resolvable:$true] %s44
      %50 = dma.hbm_to_vmem [thread:$0]  %s3, 512, %s45, [#allocation6], 128, 128, 8
    $region17: #{tpu_custom_call.1} parent=1 // pred_fallthru
      _
    // Predicated region
    $region18: #{tpu_custom_call.1} parent=1 // pred_check
      _
    $region19: #{tpu_custom_call.1} parent=1 // pred_check_branch
      %52 = sbr.rel (0) target = $region21
    $region20: #{tpu_custom_call.1} parent=1 // pred_region
      _
    $region21: #{tpu_custom_call.1} parent=1 // pred_fallthru
      _
    // Predicated region
    $region22: #{tpu_custom_call.1} parent=1 // pred_check
      _
    $region23: #{tpu_custom_call.1} parent=1 // pred_check_branch
      %54 = sbr.rel (0) target = $region25
    $region24: #{tpu_custom_call.1} parent=1 // pred_region
      %55 = dma.done [#allocation3], 256
    $region25: #{tpu_custom_call.1} parent=1 // pred_fallthru
      _
    // Predicated region
    $region26: #{tpu_custom_call.1} parent=1 // pred_check
      _
    $region27: #{tpu_custom_call.1} parent=1 // pred_check_branch
      %57 = sbr.rel (0) target = $region29
    $region28: #{tpu_custom_call.1} parent=1 // pred_region
      %58 = dma.done [#allocation6], 512
    $region29: #{tpu_custom_call.1} parent=1 // pred_fallthru
      _
    // Predicated region
    $region30: #{tpu_custom_call.1} parent=1 // pred_check
      _
    $region31: #{tpu_custom_call.1} parent=1 // pred_check_branch
      %60 = sbr.rel (0) target = $region33
    $region32: #{tpu_custom_call.1} parent=1 // pred_region
      %61 = dma.done [#allocation6], 512
    $region33: #{tpu_custom_call.1} parent=1 // pred_fallthru
      _
    %v62 = vld [vmem:[#allocation2] sm:$0xff]
    %v63 = vld [vmem:[#allocation2 + $0x8] sm:$0xff]
    %v64 = vld [vmem:[#allocation5] sm:$0xff]
    %v65 = vld [vmem:[#allocation5 + $0x8] sm:$0xff]
    %v66 = vld [vmem:[#allocation5 + $0x10] sm:$0xff]
    %v67 = vld [vmem:[#allocation5 + $0x18] sm:$0xff]
    %v68 = vld [vmem:[%s2] sm:$0x1]
    %v70 = vlaneseq
    %v71 = vshrl.u32 %v70, 7
    %v72 = vsub.s32 0, %v71
    %v73 = vrot.slane %v68, %v72
    %vm75 = vcmask 261120
    %v77 = vsel %vm75, %v62, 0
    %v80 = vsel %vm75, %v63, 0
    %82 = vmatprep.subr.mxu0 0.0
    %83 = vmatpush1.msra.mxu0 %v64
    %84 = vmatprep.subr.mxu0 0.0
    %85 = vmatpush1.msra.mxu0 %v65
    %86 = vmatprep.subr.mxu0 0.0
    %87 = vmatpush1.msra.mxu0 %v66
    %88 = vmatprep.subr.mxu0 0.0
    %89 = vmatpush1.msra.mxu0 %v67
    %90 = vmatprep.subr.mxu0 0.0
    %91 = vmatpush1.msra.mxu0 0.0
    %92 = vmatprep.subr.mxu0 0.0
    %93 = vmatpush1.msra.mxu0 0.0
    %94 = vmatprep.subr.mxu0 0.0
    %95 = vmatpush1.msra.mxu0 0.0
    %96 = vmatprep.subr.mxu0 0.0
    %97 = vmatpush1.msra.mxu0 0.0
    %98 = vmatprep.subr.mxu0 0.0
    %99 = vmatpush1.msra.mxu0 0.0
    %100 = vmatprep.subr.mxu0 0.0
    %101 = vmatpush1.msra.mxu0 0.0
    %102 = vmatprep.subr.mxu0 0.0
    %103 = vmatpush1.msra.mxu0 0.0
    %104 = vmatprep.subr.mxu0 0.0
    %105 = vmatpush1.msra.mxu0 0.0
    %106 = vmatprep.subr.mxu0 0.0
    %107 = vmatpush1.msra.mxu0 0.0
    %108 = vmatprep.subr.mxu0 0.0
    %109 = vmatpush1.msra.mxu0 0.0
    %110 = vmatprep.subr.mxu0 0.0
    %111 = vmatpush1.msra.mxu0 0.0
    %112 = vmatprep.subr.mxu0 0.0
    %113 = vmatpush1.msra.mxu0 0.0
    %114 = vmatprep.subr.mxu0 0.0
    %115 = vmatpush1.msra.mxu0 0.0
    %116 = vmatprep.subr.mxu0 0.0
    %117 = vmatpush1.msra.mxu0 0.0
    %118 = vmatprep.subr.mxu0 0.0
    %119 = vmatpush1.msra.mxu0 0.0
    %120 = vmatprep.subr.mxu0 0.0
    %121 = vmatpush1.msra.mxu0 0.0
    %122 = vmatprep.subr.mxu0 0.0
    %123 = vmatpush1.msra.mxu0 0.0
    %124 = vmatprep.subr.mxu0 0.0
    %125 = vmatpush1.msra.mxu0 0.0
    %126 = vmatprep.subr.mxu0 0.0
    %127 = vmatpush1.msra.mxu0 0.0
    %128 = vmatprep.subr.mxu0 0.0
    %129 = vmatpush1.msra.mxu0 0.0
    %130 = vmatprep.subr.mxu0 0.0
    %131 = vmatpush1.msra.mxu0 0.0
    %132 = vmatprep.subr.mxu0 0.0
    %133 = vmatpush1.msra.mxu0 0.0
    %134 = vmatprep.subr.mxu0 0.0
    %135 = vmatpush1.msra.mxu0 0.0
    %136 = vmatprep.subr.mxu0 0.0
    %137 = vmatpush1.msra.mxu0 0.0
    %138 = vmatprep.subr.mxu0 0.0
    %139 = vmatpush1.msra.mxu0 0.0
    %140 = vmatprep.subr.mxu0 0.0
    %141 = vmatpush1.msra.mxu0 0.0
    %142 = vmatprep.subr.mxu0 0.0
    %143 = vmatpush1.msra.mxu0 0.0
    %144 = vmatprep.subr.mxu0 0.0
    %145 = vmatpush1.msra.mxu0 0.0
    %146 = vmatprep.mubr.f32.mxu0 0.0
    %147 = vmatmul.mubr.f32.gmra.mrb[0].mxu0 %v77
    %v148 = vpop.f32.mrb[0].mxu0
    %v149 = vadd.f32 %v73, %v148
    %v150 = vpop.f32.mrb[0].mxu0
    %151 = vmatprep.mubr.f32.mxu0 0.0
    %152 = vmatmul.mubr.f32.gmra.mrb[0].mxu0 %v80
    %v153 = vpop.f32.mrb[0].mxu0
    %v154 = vadd.f32 %v73, %v153
    %v155 = vpop.f32.mrb[0].mxu0
    %156 = vdwg.mxu0
    %v157 = vlaneseq
    %v158 = vshrl.u32 %v157, 7
    %v159 = vlaneseq
    %v160 = vand.u32 %v159, 127
    %vm161 = vcmp.ge.s32.totalorder %v158, %v160
    %163 = vrot.lane.b32.xlu0 %v149, 120
    %v164 = vpop.permute.xlu0 %163
    %vm165 = vcmask 64512
    %v166 = vsel %vm165, %v149, 0
    %v168 = vsel %vm165, %v164, 0
    %170 = vmatprep.subr.mxu0 0.0
    %171 = vmatpush1.xpose.msra.mxu0 %v168
    %172 = vmatprep.subr.mxu0 0.0
    %173 = vmatpush1.xpose.msra.mxu0 0.0
    %174 = vmatprep.subr.mxu0 0.0
    %175 = vmatpush1.xpose.msra.mxu0 0.0
    %176 = vmatprep.subr.mxu0 0.0
    %177 = vmatpush1.xpose.msra.mxu0 0.0
    %178 = vmatprep.subr.mxu0 0.0
    %179 = vmatpush1.xpose.msra.mxu0 0.0
    %180 = vmatprep.subr.mxu0 0.0
    %181 = vmatpush1.xpose.msra.mxu0 0.0
    %182 = vmatprep.subr.mxu0 0.0
    %183 = vmatpush1.xpose.msra.mxu0 0.0
    %184 = vmatprep.subr.mxu0 0.0
    %185 = vmatpush1.xpose.msra.mxu0 0.0
    %186 = vmatprep.subr.mxu0 0.0
    %187 = vmatpush1.xpose.msra.mxu0 0.0
    %188 = vmatprep.subr.mxu0 0.0
    %189 = vmatpush1.xpose.msra.mxu0 0.0
    %190 = vmatprep.subr.mxu0 0.0
    %191 = vmatpush1.xpose.msra.mxu0 0.0
    %192 = vmatprep.subr.mxu0 0.0
    %193 = vmatpush1.xpose.msra.mxu0 0.0
    %194 = vmatprep.subr.mxu0 0.0
    %195 = vmatpush1.xpose.msra.mxu0 0.0
    %196 = vmatprep.subr.mxu0 0.0
    %197 = vmatpush1.xpose.msra.mxu0 0.0
    %198 = vmatprep.subr.mxu0 0.0
    %199 = vmatpush1.xpose.msra.mxu0 0.0
    %200 = vmatprep.subr.mxu0 0.0
    %201 = vmatpush1.xpose.msra.mxu0 0.0
    %202 = vmatprep.subr.mxu0 0.0
    %203 = vmatpush1.xpose.msra.mxu0 0.0
    %204 = vmatprep.subr.mxu0 0.0
    %205 = vmatpush1.xpose.msra.mxu0 0.0
    %206 = vmatprep.subr.mxu0 0.0
    %207 = vmatpush1.xpose.msra.mxu0 0.0
    %208 = vmatprep.subr.mxu0 0.0
    %209 = vmatpush1.xpose.msra.mxu0 0.0
    %210 = vmatprep.subr.mxu0 0.0
    %211 = vmatpush1.xpose.msra.mxu0 0.0
    %212 = vmatprep.subr.mxu0 0.0
    %213 = vmatpush1.xpose.msra.mxu0 0.0
    %214 = vmatprep.subr.mxu0 0.0
    %215 = vmatpush1.xpose.msra.mxu0 0.0
    %216 = vmatprep.subr.mxu0 0.0
    %217 = vmatpush1.xpose.msra.mxu0 0.0
    %218 = vmatprep.subr.mxu0 0.0
    %219 = vmatpush1.xpose.msra.mxu0 0.0
    %220 = vmatprep.subr.mxu0 0.0
    %221 = vmatpush1.xpose.msra.mxu0 0.0
    %222 = vmatprep.subr.mxu0 0.0
    %223 = vmatpush1.xpose.msra.mxu0 0.0
    %224 = vmatprep.subr.mxu0 0.0
    %225 = vmatpush1.xpose.msra.mxu0 0.0
    %226 = vmatprep.subr.mxu0 0.0
    %227 = vmatpush1.xpose.msra.mxu0 0.0
    %228 = vmatprep.subr.mxu0 0.0
    %229 = vmatpush1.xpose.msra.mxu0 0.0
    %230 = vmatprep.subr.mxu0 0.0
    %231 = vmatpush1.xpose.msra.mxu0 0.0
    %232 = vmatprep.subr.mxu0 0.0
    %233 = vmatpush1.xpose.msra.mxu0 0.0
    %234 = vmatprep.mubr.f32.mxu0 0.0
    %235 = vmatmul.mubr.f32.gmra.mrb[0].mxu0 %v166
    %v236 = vpop.f32.mrb[0].mxu0
    %v237 = vadd.f32 0.0, %v236
    %v238 = vpop.f32.mrb[0].mxu0
    %239 = vdwg.mxu0
    %241 = vrot.lane.b32.xlu0 %v154, 120
    %v242 = vpop.permute.xlu0 %241
    %v243 = vsel %vm165, %v154, 0
    %v245 = vsel %vm165, %v242, 0
    %247 = vmatprep.subr.mxu0 0.0
    %248 = vmatpush1.xpose.msra.mxu0 %v245
    %249 = vmatprep.subr.mxu0 0.0
    %250 = vmatpush1.xpose.msra.mxu0 0.0
    %251 = vmatprep.subr.mxu0 0.0
    %252 = vmatpush1.xpose.msra.mxu0 0.0
    %253 = vmatprep.subr.mxu0 0.0
    %254 = vmatpush1.xpose.msra.mxu0 0.0
    %255 = vmatprep.subr.mxu0 0.0
    %256 = vmatpush1.xpose.msra.mxu0 0.0
    %257 = vmatprep.subr.mxu0 0.0
    %258 = vmatpush1.xpose.msra.mxu0 0.0
    %259 = vmatprep.subr.mxu0 0.0
    %260 = vmatpush1.xpose.msra.mxu0 0.0
    %261 = vmatprep.subr.mxu0 0.0
    %262 = vmatpush1.xpose.msra.mxu0 0.0
    %263 = vmatprep.subr.mxu0 0.0
    %264 = vmatpush1.xpose.msra.mxu0 0.0
    %265 = vmatprep.subr.mxu0 0.0
    %266 = vmatpush1.xpose.msra.mxu0 0.0
    %267 = vmatprep.subr.mxu0 0.0
    %268 = vmatpush1.xpose.msra.mxu0 0.0
    %269 = vmatprep.subr.mxu0 0.0
    %270 = vmatpush1.xpose.msra.mxu0 0.0
    %271 = vmatprep.subr.mxu0 0.0
    %272 = vmatpush1.xpose.msra.mxu0 0.0
    %273 = vmatprep.subr.mxu0 0.0
    %274 = vmatpush1.xpose.msra.mxu0 0.0
    %275 = vmatprep.subr.mxu0 0.0
    %276 = vmatpush1.xpose.msra.mxu0 0.0
    %277 = vmatprep.subr.mxu0 0.0
    %278 = vmatpush1.xpose.msra.mxu0 0.0
    %279 = vmatprep.subr.mxu0 0.0
    %280 = vmatpush1.xpose.msra.mxu0 0.0
    %281 = vmatprep.subr.mxu0 0.0
    %282 = vmatpush1.xpose.msra.mxu0 0.0
    %283 = vmatprep.subr.mxu0 0.0
    %284 = vmatpush1.xpose.msra.mxu0 0.0
    %285 = vmatprep.subr.mxu0 0.0
    %286 = vmatpush1.xpose.msra.mxu0 0.0
    %287 = vmatprep.subr.mxu0 0.0
    %288 = vmatpush1.xpose.msra.mxu0 0.0
    %289 = vmatprep.subr.mxu0 0.0
    %290 = vmatpush1.xpose.msra.mxu0 0.0
    %291 = vmatprep.subr.mxu0 0.0
    %292 = vmatpush1.xpose.msra.mxu0 0.0
    %293 = vmatprep.subr.mxu0 0.0
    %294 = vmatpush1.xpose.msra.mxu0 0.0
    %295 = vmatprep.subr.mxu0 0.0
    %296 = vmatpush1.xpose.msra.mxu0 0.0
    %297 = vmatprep.subr.mxu0 0.0
    %298 = vmatpush1.xpose.msra.mxu0 0.0
    %299 = vmatprep.subr.mxu0 0.0
    %300 = vmatpush1.xpose.msra.mxu0 0.0
    %301 = vmatprep.subr.mxu0 0.0
    %302 = vmatpush1.xpose.msra.mxu0 0.0
    %303 = vmatprep.subr.mxu0 0.0
    %304 = vmatpush1.xpose.msra.mxu0 0.0
    %305 = vmatprep.subr.mxu0 0.0
    %306 = vmatpush1.xpose.msra.mxu0 0.0
    %307 = vmatprep.subr.mxu0 0.0
    %308 = vmatpush1.xpose.msra.mxu0 0.0
    %309 = vmatprep.subr.mxu0 0.0
    %310 = vmatpush1.xpose.msra.mxu0 0.0
    %311 = vmatprep.mubr.f32.mxu0 0.0
    %312 = vmatmul.mubr.f32.gmra.mrb[0].mxu0 %v243
    %v313 = vpop.f32.mrb[0].mxu0
    %v314 = vadd.f32 0.0, %v313
    %v315 = vpop.f32.mrb[0].mxu0
    %316 = vdwg.mxu0
    %v317 = vmul.f32 %v237, 0.35355338
    %v318 = vmul.f32 %v314, 0.35355338
    %v319 = vsel %vm161, 1, 0
    %vm320 = vcmp.eq.s32.totalorder %v319, 1
    %v321 = vsel %vm320, %v317, -10000.0
    %v322 = vsel %vm320, %v318, -10000.0
    %v323 = vsel %vm165, %v321, -inf
    %324 = vmax.xlane.f32.xlu0 %v323
    %v325 = vpop.xlane.xlu0 %324
    %v326 = vsel %vm165, %v322, -inf
    %327 = vmax.xlane.f32.xlu0 %v326
    %v328 = vpop.xlane.xlu0 %327
    %v329 = vsub.f32 %v321, %v325
    %v330 = vsub.f32 %v322, %v328
    %v331 = vmul.f32 %v329, 1.442695
    %v332 = vpow.pop %v331
    %v333 = vmul.f32 %v330, 1.442695
    %v334 = vpow.pop %v333
    %v335 = vsel %vm165, %v332, 0.0
    %336 = vadd.xlane.f32.xlu0 %v335
    %v337 = vpop.xlane.xlu0 %336
    %v338 = vsel %vm165, %v334, 0.0
    %339 = vadd.xlane.f32.xlu0 %v338
    %v340 = vpop.xlane.xlu0 %339
    %v341 = vrcp.pop %v337
    %v342 = vmul.f32 %v332, %v341
    %v343 = vrcp.pop %v340
    %v344 = vmul.f32 %v334, %v343
    %345 = vrot.lane.b32.xlu0 %v149, 112
    %v346 = vpop.permute.xlu0 %345
    %v349 = vsel %vm165, %v342, 0
    %351 = vmatprep.subr.mxu0 0.0
    %352 = vmatpush1.msra.mxu0 %v346
    %353 = vmatprep.subr.mxu0 0.0
    %354 = vmatpush1.msra.mxu0 0.0
    %355 = vmatprep.subr.mxu0 0.0
    %356 = vmatpush1.msra.mxu0 0.0
    %357 = vmatprep.subr.mxu0 0.0
    %358 = vmatpush1.msra.mxu0 0.0
    %359 = vmatprep.subr.mxu0 0.0
    %360 = vmatpush1.msra.mxu0 0.0
    %361 = vmatprep.subr.mxu0 0.0
    %362 = vmatpush1.msra.mxu0 0.0
    %363 = vmatprep.subr.mxu0 0.0
    %364 = vmatpush1.msra.mxu0 0.0
    %365 = vmatprep.subr.mxu0 0.0
    %366 = vmatpush1.msra.mxu0 0.0
    %367 = vmatprep.subr.mxu0 0.0
    %368 = vmatpush1.msra.mxu0 0.0
    %369 = vmatprep.subr.mxu0 0.0
    %370 = vmatpush1.msra.mxu0 0.0
    %371 = vmatprep.subr.mxu0 0.0
    %372 = vmatpush1.msra.mxu0 0.0
    %373 = vmatprep.subr.mxu0 0.0
    %374 = vmatpush1.msra.mxu0 0.0
    %375 = vmatprep.subr.mxu0 0.0
    %376 = vmatpush1.msra.mxu0 0.0
    %377 = vmatprep.subr.mxu0 0.0
    %378 = vmatpush1.msra.mxu0 0.0
    %379 = vmatprep.subr.mxu0 0.0
    %380 = vmatpush1.msra.mxu0 0.0
    %381 = vmatprep.subr.mxu0 0.0
    %382 = vmatpush1.msra.mxu0 0.0
    %383 = vmatprep.subr.mxu0 0.0
    %384 = vmatpush1.msra.mxu0 0.0
    %385 = vmatprep.subr.mxu0 0.0
    %386 = vmatpush1.msra.mxu0 0.0
    %387 = vmatprep.subr.mxu0 0.0
    %388 = vmatpush1.msra.mxu0 0.0
    %389 = vmatprep.subr.mxu0 0.0
    %390 = vmatpush1.msra.mxu0 0.0
    %391 = vmatprep.subr.mxu0 0.0
    %392 = vmatpush1.msra.mxu0 0.0
    %393 = vmatprep.subr.mxu0 0.0
    %394 = vmatpush1.msra.mxu0 0.0
    %395 = vmatprep.subr.mxu0 0.0
    %396 = vmatpush1.msra.mxu0 0.0
    %397 = vmatprep.subr.mxu0 0.0
    %398 = vmatpush1.msra.mxu0 0.0
    %399 = vmatprep.subr.mxu0 0.0
    %400 = vmatpush1.msra.mxu0 0.0
    %401 = vmatprep.subr.mxu0 0.0
    %402 = vmatpush1.msra.mxu0 0.0
    %403 = vmatprep.subr.mxu0 0.0
    %404 = vmatpush1.msra.mxu0 0.0
    %405 = vmatprep.subr.mxu0 0.0
    %406 = vmatpush1.msra.mxu0 0.0
    %407 = vmatprep.subr.mxu0 0.0
    %408 = vmatpush1.msra.mxu0 0.0
    %409 = vmatprep.subr.mxu0 0.0
    %410 = vmatpush1.msra.mxu0 0.0
    %411 = vmatprep.subr.mxu0 0.0
    %412 = vmatpush1.msra.mxu0 0.0
    %413 = vmatprep.subr.mxu0 0.0
    %414 = vmatpush1.msra.mxu0 0.0
    %415 = vmatprep.mubr.f32.mxu0 0.0
    %416 = vmatmul.mubr.f32.gmra.mrb[0].mxu0 %v349
    %v417 = vpop.f32.mrb[0].mxu0
    %v418 = vadd.f32 0.0, %v417
    %v419 = vpop.f32.mrb[0].mxu0
    %420 = vdwg.mxu0
    %421 = vrot.lane.b32.xlu0 %v154, 112
    %v422 = vpop.permute.xlu0 %421
    %v425 = vsel %vm165, %v344, 0
    %427 = vmatprep.subr.mxu0 0.0
    %428 = vmatpush1.msra.mxu0 %v422
    %429 = vmatprep.subr.mxu0 0.0
    %430 = vmatpush1.msra.mxu0 0.0
    %431 = vmatprep.subr.mxu0 0.0
    %432 = vmatpush1.msra.mxu0 0.0
    %433 = vmatprep.subr.mxu0 0.0
    %434 = vmatpush1.msra.mxu0 0.0
    %435 = vmatprep.subr.mxu0 0.0
    %436 = vmatpush1.msra.mxu0 0.0
    %437 = vmatprep.subr.mxu0 0.0
    %438 = vmatpush1.msra.mxu0 0.0
    %439 = vmatprep.subr.mxu0 0.0
    %440 = vmatpush1.msra.mxu0 0.0
    %441 = vmatprep.subr.mxu0 0.0
    %442 = vmatpush1.msra.mxu0 0.0
    %443 = vmatprep.subr.mxu0 0.0
    %444 = vmatpush1.msra.mxu0 0.0
    %445 = vmatprep.subr.mxu0 0.0
    %446 = vmatpush1.msra.mxu0 0.0
    %447 = vmatprep.subr.mxu0 0.0
    %448 = vmatpush1.msra.mxu0 0.0
    %449 = vmatprep.subr.mxu0 0.0
    %450 = vmatpush1.msra.mxu0 0.0
    %451 = vmatprep.subr.mxu0 0.0
    %452 = vmatpush1.msra.mxu0 0.0
    %453 = vmatprep.subr.mxu0 0.0
    %454 = vmatpush1.msra.mxu0 0.0
    %455 = vmatprep.subr.mxu0 0.0
    %456 = vmatpush1.msra.mxu0 0.0
    %457 = vmatprep.subr.mxu0 0.0
    %458 = vmatpush1.msra.mxu0 0.0
    %459 = vmatprep.subr.mxu0 0.0
    %460 = vmatpush1.msra.mxu0 0.0
    %461 = vmatprep.subr.mxu0 0.0
    %462 = vmatpush1.msra.mxu0 0.0
    %463 = vmatprep.subr.mxu0 0.0
    %464 = vmatpush1.msra.mxu0 0.0
    %465 = vmatprep.subr.mxu0 0.0
    %466 = vmatpush1.msra.mxu0 0.0
    %467 = vmatprep.subr.mxu0 0.0
    %468 = vmatpush1.msra.mxu0 0.0
    %469 = vmatprep.subr.mxu0 0.0
    %470 = vmatpush1.msra.mxu0 0.0
    %471 = vmatprep.subr.mxu0 0.0
    %472 = vmatpush1.msra.mxu0 0.0
    %473 = vmatprep.subr.mxu0 0.0
    %474 = vmatpush1.msra.mxu0 0.0
    %475 = vmatprep.subr.mxu0 0.0
    %476 = vmatpush1.msra.mxu0 0.0
    %477 = vmatprep.subr.mxu0 0.0
    %478 = vmatpush1.msra.mxu0 0.0
    %479 = vmatprep.subr.mxu0 0.0
    %480 = vmatpush1.msra.mxu0 0.0
    %481 = vmatprep.subr.mxu0 0.0
    %482 = vmatpush1.msra.mxu0 0.0
    %483 = vmatprep.subr.mxu0 0.0
    %484 = vmatpush1.msra.mxu0 0.0
    %485 = vmatprep.subr.mxu0 0.0
    %486 = vmatpush1.msra.mxu0 0.0
    %487 = vmatprep.subr.mxu0 0.0
    %488 = vmatpush1.msra.mxu0 0.0
    %489 = vmatprep.subr.mxu0 0.0
    %490 = vmatpush1.msra.mxu0 0.0
    %491 = vmatprep.mubr.f32.mxu0 0.0
    %492 = vmatmul.mubr.f32.gmra.mrb[0].mxu0 %v425
    %v493 = vpop.f32.mrb[0].mxu0
    %v494 = vadd.f32 0.0, %v493
    %v495 = vpop.f32.mrb[0].mxu0
    %496 = vdwg.mxu0
    %497 = vrot.lane.b32.xlu0 %v149, 104
    %v498 = vpop.permute.xlu0 %497
    %499 = vrot.lane.b32.xlu0 %v149, 96
    %v500 = vpop.permute.xlu0 %499
    %v501 = vsel %vm165, %v498, 0
    %v503 = vsel %vm165, %v500, 0
    %505 = vmatprep.subr.mxu0 0.0
    %506 = vmatpush1.xpose.msra.mxu0 %v503
    %507 = vmatprep.subr.mxu0 0.0
    %508 = vmatpush1.xpose.msra.mxu0 0.0
    %509 = vmatprep.subr.mxu0 0.0
    %510 = vmatpush1.xpose.msra.mxu0 0.0
    %511 = vmatprep.subr.mxu0 0.0
    %512 = vmatpush1.xpose.msra.mxu0 0.0
    %513 = vmatprep.subr.mxu0 0.0
    %514 = vmatpush1.xpose.msra.mxu0 0.0
    %515 = vmatprep.subr.mxu0 0.0
    %516 = vmatpush1.xpose.msra.mxu0 0.0
    %517 = vmatprep.subr.mxu0 0.0
    %518 = vmatpush1.xpose.msra.mxu0 0.0
    %519 = vmatprep.subr.mxu0 0.0
    %520 = vmatpush1.xpose.msra.mxu0 0.0
    %521 = vmatprep.subr.mxu0 0.0
    %522 = vmatpush1.xpose.msra.mxu0 0.0
    %523 = vmatprep.subr.mxu0 0.0
    %524 = vmatpush1.xpose.msra.mxu0 0.0
    %525 = vmatprep.subr.mxu0 0.0
    %526 = vmatpush1.xpose.msra.mxu0 0.0
    %527 = vmatprep.subr.mxu0 0.0
    %528 = vmatpush1.xpose.msra.mxu0 0.0
    %529 = vmatprep.subr.mxu0 0.0
    %530 = vmatpush1.xpose.msra.mxu0 0.0
    %531 = vmatprep.subr.mxu0 0.0
    %532 = vmatpush1.xpose.msra.mxu0 0.0
    %533 = vmatprep.subr.mxu0 0.0
    %534 = vmatpush1.xpose.msra.mxu0 0.0
    %535 = vmatprep.subr.mxu0 0.0
    %536 = vmatpush1.xpose.msra.mxu0 0.0
    %537 = vmatprep.subr.mxu0 0.0
    %538 = vmatpush1.xpose.msra.mxu0 0.0
    %539 = vmatprep.subr.mxu0 0.0
    %540 = vmatpush1.xpose.msra.mxu0 0.0
    %541 = vmatprep.subr.mxu0 0.0
    %542 = vmatpush1.xpose.msra.mxu0 0.0
    %543 = vmatprep.subr.mxu0 0.0
    %544 = vmatpush1.xpose.msra.mxu0 0.0
    %545 = vmatprep.subr.mxu0 0.0
    %546 = vmatpush1.xpose.msra.mxu0 0.0
    %547 = vmatprep.subr.mxu0 0.0
    %548 = vmatpush1.xpose.msra.mxu0 0.0
    %549 = vmatprep.subr.mxu0 0.0
    %550 = vmatpush1.xpose.msra.mxu0 0.0
    %551 = vmatprep.subr.mxu0 0.0
    %552 = vmatpush1.xpose.msra.mxu0 0.0
    %553 = vmatprep.subr.mxu0 0.0
    %554 = vmatpush1.xpose.msra.mxu0 0.0
    %555 = vmatprep.subr.mxu0 0.0
    %556 = vmatpush1.xpose.msra.mxu0 0.0
    %557 = vmatprep.subr.mxu0 0.0
    %558 = vmatpush1.xpose.msra.mxu0 0.0
    %559 = vmatprep.subr.mxu0 0.0
    %560 = vmatpush1.xpose.msra.mxu0 0.0
    %561 = vmatprep.subr.mxu0 0.0
    %562 = vmatpush1.xpose.msra.mxu0 0.0
    %563 = vmatprep.subr.mxu0 0.0
    %564 = vmatpush1.xpose.msra.mxu0 0.0
    %565 = vmatprep.subr.mxu0 0.0
    %566 = vmatpush1.xpose.msra.mxu0 0.0
    %567 = vmatprep.subr.mxu0 0.0
    %568 = vmatpush1.xpose.msra.mxu0 0.0
    %569 = vmatprep.mubr.f32.mxu0 0.0
    %570 = vmatmul.mubr.f32.gmra.mrb[0].mxu0 %v501
    %v571 = vpop.f32.mrb[0].mxu0
    %v572 = vadd.f32 0.0, %v571
    %v573 = vpop.f32.mrb[0].mxu0
    %574 = vdwg.mxu0
    %575 = vrot.lane.b32.xlu0 %v154, 104
    %v576 = vpop.permute.xlu0 %575
    %577 = vrot.lane.b32.xlu0 %v154, 96
    %v578 = vpop.permute.xlu0 %577
    %v579 = vsel %vm165, %v576, 0
    %v581 = vsel %vm165, %v578, 0
    %583 = vmatprep.subr.mxu0 0.0
    %584 = vmatpush1.xpose.msra.mxu0 %v581
    %585 = vmatprep.subr.mxu0 0.0
    %586 = vmatpush1.xpose.msra.mxu0 0.0
    %587 = vmatprep.subr.mxu0 0.0
    %588 = vmatpush1.xpose.msra.mxu0 0.0
    %589 = vmatprep.subr.mxu0 0.0
    %590 = vmatpush1.xpose.msra.mxu0 0.0
    %591 = vmatprep.subr.mxu0 0.0
    %592 = vmatpush1.xpose.msra.mxu0 0.0
    %593 = vmatprep.subr.mxu0 0.0
    %594 = vmatpush1.xpose.msra.mxu0 0.0
    %595 = vmatprep.subr.mxu0 0.0
    %596 = vmatpush1.xpose.msra.mxu0 0.0
    %597 = vmatprep.subr.mxu0 0.0
    %598 = vmatpush1.xpose.msra.mxu0 0.0
    %599 = vmatprep.subr.mxu0 0.0
    %600 = vmatpush1.xpose.msra.mxu0 0.0
    %601 = vmatprep.subr.mxu0 0.0
    %602 = vmatpush1.xpose.msra.mxu0 0.0
    %603 = vmatprep.subr.mxu0 0.0
    %604 = vmatpush1.xpose.msra.mxu0 0.0
    %605 = vmatprep.subr.mxu0 0.0
    %606 = vmatpush1.xpose.msra.mxu0 0.0
    %607 = vmatprep.subr.mxu0 0.0
    %608 = vmatpush1.xpose.msra.mxu0 0.0
    %609 = vmatprep.subr.mxu0 0.0
    %610 = vmatpush1.xpose.msra.mxu0 0.0
    %611 = vmatprep.subr.mxu0 0.0
    %612 = vmatpush1.xpose.msra.mxu0 0.0
    %613 = vmatprep.subr.mxu0 0.0
    %614 = vmatpush1.xpose.msra.mxu0 0.0
    %615 = vmatprep.subr.mxu0 0.0
    %616 = vmatpush1.xpose.msra.mxu0 0.0
    %617 = vmatprep.subr.mxu0 0.0
    %618 = vmatpush1.xpose.msra.mxu0 0.0
    %619 = vmatprep.subr.mxu0 0.0
    %620 = vmatpush1.xpose.msra.mxu0 0.0
    %621 = vmatprep.subr.mxu0 0.0
    %622 = vmatpush1.xpose.msra.mxu0 0.0
    %623 = vmatprep.subr.mxu0 0.0
    %624 = vmatpush1.xpose.msra.mxu0 0.0
    %625 = vmatprep.subr.mxu0 0.0
    %626 = vmatpush1.xpose.msra.mxu0 0.0
    %627 = vmatprep.subr.mxu0 0.0
    %628 = vmatpush1.xpose.msra.mxu0 0.0
    %629 = vmatprep.subr.mxu0 0.0
    %630 = vmatpush1.xpose.msra.mxu0 0.0
    %631 = vmatprep.subr.mxu0 0.0
    %632 = vmatpush1.xpose.msra.mxu0 0.0
    %633 = vmatprep.subr.mxu0 0.0
    %634 = vmatpush1.xpose.msra.mxu0 0.0
    %635 = vmatprep.subr.mxu0 0.0
    %636 = vmatpush1.xpose.msra.mxu0 0.0
    %637 = vmatprep.subr.mxu0 0.0
    %638 = vmatpush1.xpose.msra.mxu0 0.0
    %639 = vmatprep.subr.mxu0 0.0
    %640 = vmatpush1.xpose.msra.mxu0 0.0
    %641 = vmatprep.subr.mxu0 0.0
    %642 = vmatpush1.xpose.msra.mxu0 0.0
    %643 = vmatprep.subr.mxu0 0.0
    %644 = vmatpush1.xpose.msra.mxu0 0.0
    %645 = vmatprep.subr.mxu0 0.0
    %646 = vmatpush1.xpose.msra.mxu0 0.0
    %647 = vmatprep.mubr.f32.mxu0 0.0
    %648 = vmatmul.mubr.f32.gmra.mrb[0].mxu0 %v579
    %v649 = vpop.f32.mrb[0].mxu0
    %v650 = vadd.f32 0.0, %v649
    %v651 = vpop.f32.mrb[0].mxu0
    %652 = vdwg.mxu0
    %v653 = vmul.f32 %v572, 0.35355338
    %v654 = vmul.f32 %v650, 0.35355338
    %v655 = vsel %vm320, %v653, -10000.0
    %v656 = vsel %vm320, %v654, -10000.0
    %v657 = vsel %vm165, %v655, -inf
    %658 = vmax.xlane.f32.xlu0 %v657
    %v659 = vpop.xlane.xlu0 %658
    %v660 = vsel %vm165, %v656, -inf
    %661 = vmax.xlane.f32.xlu0 %v660
    %v662 = vpop.xlane.xlu0 %661
    %v663 = vsub.f32 %v655, %v659
    %v664 = vsub.f32 %v656, %v662
    %v665 = vmul.f32 %v663, 1.442695
    %v666 = vpow.pop %v665
    %v667 = vmul.f32 %v664, 1.442695
    %v668 = vpow.pop %v667
    %v669 = vsel %vm165, %v666, 0.0
    %670 = vadd.xlane.f32.xlu0 %v669
    %v671 = vpop.xlane.xlu0 %670
    %v672 = vsel %vm165, %v668, 0.0
    %673 = vadd.xlane.f32.xlu0 %v672
    %v674 = vpop.xlane.xlu0 %673
    %v675 = vrcp.pop %v671
    %v676 = vmul.f32 %v666, %v675
    %v677 = vrcp.pop %v674
    %v678 = vmul.f32 %v668, %v677
    %679 = vrot.lane.b32.xlu0 %v149, 88
    %v680 = vpop.permute.xlu0 %679
    %v683 = vsel %vm165, %v676, 0
    %685 = vmatprep.subr.mxu0 0.0
    %686 = vmatpush1.msra.mxu0 %v680
    %687 = vmatprep.subr.mxu0 0.0
    %688 = vmatpush1.msra.mxu0 0.0
    %689 = vmatprep.subr.mxu0 0.0
    %690 = vmatpush1.msra.mxu0 0.0
    %691 = vmatprep.subr.mxu0 0.0
    %692 = vmatpush1.msra.mxu0 0.0
    %693 = vmatprep.subr.mxu0 0.0
    %694 = vmatpush1.msra.mxu0 0.0
    %695 = vmatprep.subr.mxu0 0.0
    %696 = vmatpush1.msra.mxu0 0.0
    %697 = vmatprep.subr.mxu0 0.0
    %698 = vmatpush1.msra.mxu0 0.0
    %699 = vmatprep.subr.mxu0 0.0
    %700 = vmatpush1.msra.mxu0 0.0
    %701 = vmatprep.subr.mxu0 0.0
    %702 = vmatpush1.msra.mxu0 0.0
    %703 = vmatprep.subr.mxu0 0.0
    %704 = vmatpush1.msra.mxu0 0.0
    %705 = vmatprep.subr.mxu0 0.0
    %706 = vmatpush1.msra.mxu0 0.0
    %707 = vmatprep.subr.mxu0 0.0
    %708 = vmatpush1.msra.mxu0 0.0
    %709 = vmatprep.subr.mxu0 0.0
    %710 = vmatpush1.msra.mxu0 0.0
    %711 = vmatprep.subr.mxu0 0.0
    %712 = vmatpush1.msra.mxu0 0.0
    %713 = vmatprep.subr.mxu0 0.0
    %714 = vmatpush1.msra.mxu0 0.0
    %715 = vmatprep.subr.mxu0 0.0
    %716 = vmatpush1.msra.mxu0 0.0
    %717 = vmatprep.subr.mxu0 0.0
    %718 = vmatpush1.msra.mxu0 0.0
    %719 = vmatprep.subr.mxu0 0.0
    %720 = vmatpush1.msra.mxu0 0.0
    %721 = vmatprep.subr.mxu0 0.0
    %722 = vmatpush1.msra.mxu0 0.0
    %723 = vmatprep.subr.mxu0 0.0
    %724 = vmatpush1.msra.mxu0 0.0
    %725 = vmatprep.subr.mxu0 0.0
    %726 = vmatpush1.msra.mxu0 0.0
    %727 = vmatprep.subr.mxu0 0.0
    %728 = vmatpush1.msra.mxu0 0.0
    %729 = vmatprep.subr.mxu0 0.0
    %730 = vmatpush1.msra.mxu0 0.0
    %731 = vmatprep.subr.mxu0 0.0
    %732 = vmatpush1.msra.mxu0 0.0
    %733 = vmatprep.subr.mxu0 0.0
    %734 = vmatpush1.msra.mxu0 0.0
    %735 = vmatprep.subr.mxu0 0.0
    %736 = vmatpush1.msra.mxu0 0.0
    %737 = vmatprep.subr.mxu0 0.0
    %738 = vmatpush1.msra.mxu0 0.0
    %739 = vmatprep.subr.mxu0 0.0
    %740 = vmatpush1.msra.mxu0 0.0
    %741 = vmatprep.subr.mxu0 0.0
    %742 = vmatpush1.msra.mxu0 0.0
    %743 = vmatprep.subr.mxu0 0.0
    %744 = vmatpush1.msra.mxu0 0.0
    %745 = vmatprep.subr.mxu0 0.0
    %746 = vmatpush1.msra.mxu0 0.0
    %747 = vmatprep.subr.mxu0 0.0
    %748 = vmatpush1.msra.mxu0 0.0
    %749 = vmatprep.mubr.f32.mxu0 0.0
    %750 = vmatmul.mubr.f32.gmra.mrb[0].mxu0 %v683
    %v751 = vpop.f32.mrb[0].mxu0
    %v752 = vadd.f32 0.0, %v751
    %v753 = vpop.f32.mrb[0].mxu0
    %754 = vdwg.mxu0
    %755 = vrot.lane.b32.xlu0 %v154, 88
    %v756 = vpop.permute.xlu0 %755
    %v759 = vsel %vm165, %v678, 0
    %761 = vmatprep.subr.mxu0 0.0
    %762 = vmatpush1.msra.mxu0 %v756
    %763 = vmatprep.subr.mxu0 0.0
    %764 = vmatpush1.msra.mxu0 0.0
    %765 = vmatprep.subr.mxu0 0.0
    %766 = vmatpush1.msra.mxu0 0.0
    %767 = vmatprep.subr.mxu0 0.0
    %768 = vmatpush1.msra.mxu0 0.0
    %769 = vmatprep.subr.mxu0 0.0
    %770 = vmatpush1.msra.mxu0 0.0
    %771 = vmatprep.subr.mxu0 0.0
    %772 = vmatpush1.msra.mxu0 0.0
    %773 = vmatprep.subr.mxu0 0.0
    %774 = vmatpush1.msra.mxu0 0.0
    %775 = vmatprep.subr.mxu0 0.0
    %776 = vmatpush1.msra.mxu0 0.0
    %777 = vmatprep.subr.mxu0 0.0
    %778 = vmatpush1.msra.mxu0 0.0
    %779 = vmatprep.subr.mxu0 0.0
    %780 = vmatpush1.msra.mxu0 0.0
    %781 = vmatprep.subr.mxu0 0.0
    %782 = vmatpush1.msra.mxu0 0.0
    %783 = vmatprep.subr.mxu0 0.0
    %784 = vmatpush1.msra.mxu0 0.0
    %785 = vmatprep.subr.mxu0 0.0
    %786 = vmatpush1.msra.mxu0 0.0
    %787 = vmatprep.subr.mxu0 0.0
    %788 = vmatpush1.msra.mxu0 0.0
    %789 = vmatprep.subr.mxu0 0.0
    %790 = vmatpush1.msra.mxu0 0.0
    %791 = vmatprep.subr.mxu0 0.0
    %792 = vmatpush1.msra.mxu0 0.0
    %793 = vmatprep.subr.mxu0 0.0
    %794 = vmatpush1.msra.mxu0 0.0
    %795 = vmatprep.subr.mxu0 0.0
    %796 = vmatpush1.msra.mxu0 0.0
    %797 = vmatprep.subr.mxu0 0.0
    %798 = vmatpush1.msra.mxu0 0.0
    %799 = vmatprep.subr.mxu0 0.0
    %800 = vmatpush1.msra.mxu0 0.0
    %801 = vmatprep.subr.mxu0 0.0
    %802 = vmatpush1.msra.mxu0 0.0
    %803 = vmatprep.subr.mxu0 0.0
    %804 = vmatpush1.msra.mxu0 0.0
    %805 = vmatprep.subr.mxu0 0.0
    %806 = vmatpush1.msra.mxu0 0.0
    %807 = vmatprep.subr.mxu0 0.0
    %808 = vmatpush1.msra.mxu0 0.0
    %809 = vmatprep.subr.mxu0 0.0
    %810 = vmatpush1.msra.mxu0 0.0
    %811 = vmatprep.subr.mxu0 0.0
    %812 = vmatpush1.msra.mxu0 0.0
    %813 = vmatprep.subr.mxu0 0.0
    %814 = vmatpush1.msra.mxu0 0.0
    %815 = vmatprep.subr.mxu0 0.0
    %816 = vmatpush1.msra.mxu0 0.0
    %817 = vmatprep.subr.mxu0 0.0
    %818 = vmatpush1.msra.mxu0 0.0
    %819 = vmatprep.subr.mxu0 0.0
    %820 = vmatpush1.msra.mxu0 0.0
    %821 = vmatprep.subr.mxu0 0.0
    %822 = vmatpush1.msra.mxu0 0.0
    %823 = vmatprep.subr.mxu0 0.0
    %824 = vmatpush1.msra.mxu0 0.0
    %825 = vmatprep.mubr.f32.mxu0 0.0
    %826 = vmatmul.mubr.f32.gmra.mrb[0].mxu0 %v759
    %v827 = vpop.f32.mrb[0].mxu0
    %v828 = vadd.f32 0.0, %v827
    %v829 = vpop.f32.mrb[0].mxu0
    %830 = vdwg.mxu0
    %831 = vrot.lane.b32.xlu0 %v149, 80
    %v832 = vpop.permute.xlu0 %831
    %833 = vrot.lane.b32.xlu0 %v149, 72
    %v834 = vpop.permute.xlu0 %833
    %v835 = vsel %vm165, %v832, 0
    %v837 = vsel %vm165, %v834, 0
    %839 = vmatprep.subr.mxu0 0.0
    %840 = vmatpush1.xpose.msra.mxu0 %v837
    %841 = vmatprep.subr.mxu0 0.0
    %842 = vmatpush1.xpose.msra.mxu0 0.0
    %843 = vmatprep.subr.mxu0 0.0
    %844 = vmatpush1.xpose.msra.mxu0 0.0
    %845 = vmatprep.subr.mxu0 0.0
    %846 = vmatpush1.xpose.msra.mxu0 0.0
    %847 = vmatprep.subr.mxu0 0.0
    %848 = vmatpush1.xpose.msra.mxu0 0.0
    %849 = vmatprep.subr.mxu0 0.0
    %850 = vmatpush1.xpose.msra.mxu0 0.0
    %851 = vmatprep.subr.mxu0 0.0
    %852 = vmatpush1.xpose.msra.mxu0 0.0
    %853 = vmatprep.subr.mxu0 0.0
    %854 = vmatpush1.xpose.msra.mxu0 0.0
    %855 = vmatprep.subr.mxu0 0.0
    %856 = vmatpush1.xpose.msra.mxu0 0.0
    %857 = vmatprep.subr.mxu0 0.0
    %858 = vmatpush1.xpose.msra.mxu0 0.0
    %859 = vmatprep.subr.mxu0 0.0
    %860 = vmatpush1.xpose.msra.mxu0 0.0
    %861 = vmatprep.subr.mxu0 0.0
    %862 = vmatpush1.xpose.msra.mxu0 0.0
    %863 = vmatprep.subr.mxu0 0.0
    %864 = vmatpush1.xpose.msra.mxu0 0.0
    %865 = vmatprep.subr.mxu0 0.0
    %866 = vmatpush1.xpose.msra.mxu0 0.0
    %867 = vmatprep.subr.mxu0 0.0
    %868 = vmatpush1.xpose.msra.mxu0 0.0
    %869 = vmatprep.subr.mxu0 0.0
    %870 = vmatpush1.xpose.msra.mxu0 0.0
    %871 = vmatprep.subr.mxu0 0.0
    %872 = vmatpush1.xpose.msra.mxu0 0.0
    %873 = vmatprep.subr.mxu0 0.0
    %874 = vmatpush1.xpose.msra.mxu0 0.0
    %875 = vmatprep.subr.mxu0 0.0
    %876 = vmatpush1.xpose.msra.mxu0 0.0
    %877 = vmatprep.subr.mxu0 0.0
    %878 = vmatpush1.xpose.msra.mxu0 0.0
    %879 = vmatprep.subr.mxu0 0.0
    %880 = vmatpush1.xpose.msra.mxu0 0.0
    %881 = vmatprep.subr.mxu0 0.0
    %882 = vmatpush1.xpose.msra.mxu0 0.0
    %883 = vmatprep.subr.mxu0 0.0
    %884 = vmatpush1.xpose.msra.mxu0 0.0
    %885 = vmatprep.subr.mxu0 0.0
    %886 = vmatpush1.xpose.msra.mxu0 0.0
    %887 = vmatprep.subr.mxu0 0.0
    %888 = vmatpush1.xpose.msra.mxu0 0.0
    %889 = vmatprep.subr.mxu0 0.0
    %890 = vmatpush1.xpose.msra.mxu0 0.0
    %891 = vmatprep.subr.mxu0 0.0
    %892 = vmatpush1.xpose.msra.mxu0 0.0
    %893 = vmatprep.subr.mxu0 0.0
    %894 = vmatpush1.xpose.msra.mxu0 0.0
    %895 = vmatprep.subr.mxu0 0.0
    %896 = vmatpush1.xpose.msra.mxu0 0.0
    %897 = vmatprep.subr.mxu0 0.0
    %898 = vmatpush1.xpose.msra.mxu0 0.0
    %899 = vmatprep.subr.mxu0 0.0
    %900 = vmatpush1.xpose.msra.mxu0 0.0
    %901 = vmatprep.subr.mxu0 0.0
    %902 = vmatpush1.xpose.msra.mxu0 0.0
    %903 = vmatprep.mubr.f32.mxu0 0.0
    %904 = vmatmul.mubr.f32.gmra.mrb[0].mxu0 %v835
    %v905 = vpop.f32.mrb[0].mxu0
    %v906 = vadd.f32 0.0, %v905
    %v907 = vpop.f32.mrb[0].mxu0
    %908 = vdwg.mxu0
    %909 = vrot.lane.b32.xlu0 %v154, 80
    %v910 = vpop.permute.xlu0 %909
    %911 = vrot.lane.b32.xlu0 %v154, 72
    %v912 = vpop.permute.xlu0 %911
    %v913 = vsel %vm165, %v910, 0
    %v915 = vsel %vm165, %v912, 0
    %917 = vmatprep.subr.mxu0 0.0
    %918 = vmatpush1.xpose.msra.mxu0 %v915
    %919 = vmatprep.subr.mxu0 0.0
    %920 = vmatpush1.xpose.msra.mxu0 0.0
    %921 = vmatprep.subr.mxu0 0.0
    %922 = vmatpush1.xpose.msra.mxu0 0.0
    %923 = vmatprep.subr.mxu0 0.0
    %924 = vmatpush1.xpose.msra.mxu0 0.0
    %925 = vmatprep.subr.mxu0 0.0
    %926 = vmatpush1.xpose.msra.mxu0 0.0
    %927 = vmatprep.subr.mxu0 0.0
    %928 = vmatpush1.xpose.msra.mxu0 0.0
    %929 = vmatprep.subr.mxu0 0.0
    %930 = vmatpush1.xpose.msra.mxu0 0.0
    %931 = vmatprep.subr.mxu0 0.0
    %932 = vmatpush1.xpose.msra.mxu0 0.0
    %933 = vmatprep.subr.mxu0 0.0
    %934 = vmatpush1.xpose.msra.mxu0 0.0
    %935 = vmatprep.subr.mxu0 0.0
    %936 = vmatpush1.xpose.msra.mxu0 0.0
    %937 = vmatprep.subr.mxu0 0.0
    %938 = vmatpush1.xpose.msra.mxu0 0.0
    %939 = vmatprep.subr.mxu0 0.0
    %940 = vmatpush1.xpose.msra.mxu0 0.0
    %941 = vmatprep.subr.mxu0 0.0
    %942 = vmatpush1.xpose.msra.mxu0 0.0
    %943 = vmatprep.subr.mxu0 0.0
    %944 = vmatpush1.xpose.msra.mxu0 0.0
    %945 = vmatprep.subr.mxu0 0.0
    %946 = vmatpush1.xpose.msra.mxu0 0.0
    %947 = vmatprep.subr.mxu0 0.0
    %948 = vmatpush1.xpose.msra.mxu0 0.0
    %949 = vmatprep.subr.mxu0 0.0
    %950 = vmatpush1.xpose.msra.mxu0 0.0
    %951 = vmatprep.subr.mxu0 0.0
    %952 = vmatpush1.xpose.msra.mxu0 0.0
    %953 = vmatprep.subr.mxu0 0.0
    %954 = vmatpush1.xpose.msra.mxu0 0.0
    %955 = vmatprep.subr.mxu0 0.0
    %956 = vmatpush1.xpose.msra.mxu0 0.0
    %957 = vmatprep.subr.mxu0 0.0
    %958 = vmatpush1.xpose.msra.mxu0 0.0
    %959 = vmatprep.subr.mxu0 0.0
    %960 = vmatpush1.xpose.msra.mxu0 0.0
    %961 = vmatprep.subr.mxu0 0.0
    %962 = vmatpush1.xpose.msra.mxu0 0.0
    %963 = vmatprep.subr.mxu0 0.0
    %964 = vmatpush1.xpose.msra.mxu0 0.0
    %965 = vmatprep.subr.mxu0 0.0
    %966 = vmatpush1.xpose.msra.mxu0 0.0
    %967 = vmatprep.subr.mxu0 0.0
    %968 = vmatpush1.xpose.msra.mxu0 0.0
    %969 = vmatprep.subr.mxu0 0.0
    %970 = vmatpush1.xpose.msra.mxu0 0.0
    %971 = vmatprep.subr.mxu0 0.0
    %972 = vmatpush1.xpose.msra.mxu0 0.0
    %973 = vmatprep.subr.mxu0 0.0
    %974 = vmatpush1.xpose.msra.mxu0 0.0
    %975 = vmatprep.subr.mxu0 0.0
    %976 = vmatpush1.xpose.msra.mxu0 0.0
    %977 = vmatprep.subr.mxu0 0.0
    %978 = vmatpush1.xpose.msra.mxu0 0.0
    %979 = vmatprep.subr.mxu0 0.0
    %980 = vmatpush1.xpose.msra.mxu0 0.0
    %981 = vmatprep.mubr.f32.mxu0 0.0
    %982 = vmatmul.mubr.f32.gmra.mrb[0].mxu0 %v913
    %v983 = vpop.f32.mrb[0].mxu0
    %v984 = vadd.f32 0.0, %v983
    %v985 = vpop.f32.mrb[0].mxu0
    %986 = vdwg.mxu0
    %v987 = vmul.f32 %v906, 0.35355338
    %v988 = vmul.f32 %v984, 0.35355338
    %v989 = vsel %vm320, %v987, -10000.0
    %v990 = vsel %vm320, %v988, -10000.0
    %v991 = vsel %vm165, %v989, -inf
    %992 = vmax.xlane.f32.xlu0 %v991
    %v993 = vpop.xlane.xlu0 %992
    %v994 = vsel %vm165, %v990, -inf
    %995 = vmax.xlane.f32.xlu0 %v994
    %v996 = vpop.xlane.xlu0 %995
    %v997 = vsub.f32 %v989, %v993
    %v998 = vsub.f32 %v990, %v996
    %v999 = vmul.f32 %v997, 1.442695
    %v1000 = vpow.pop %v999
    %v1001 = vmul.f32 %v998, 1.442695
    %v1002 = vpow.pop %v1001
    %v1003 = vsel %vm165, %v1000, 0.0
    %1004 = vadd.xlane.f32.xlu0 %v1003
    %v1005 = vpop.xlane.xlu0 %1004
    %v1006 = vsel %vm165, %v1002, 0.0
    %1007 = vadd.xlane.f32.xlu0 %v1006
    %v1008 = vpop.xlane.xlu0 %1007
    %v1009 = vrcp.pop %v1005
    %v1010 = vmul.f32 %v1000, %v1009
    %v1011 = vrcp.pop %v1008
    %v1012 = vmul.f32 %v1002, %v1011
    %1013 = vrot.lane.b32.xlu0 %v149, 64
    %v1014 = vpop.permute.xlu0 %1013
    %v1017 = vsel %vm165, %v1010, 0
    %1019 = vmatprep.subr.mxu0 0.0
    %1020 = vmatpush1.msra.mxu0 %v1014
    %1021 = vmatprep.subr.mxu0 0.0
    %1022 = vmatpush1.msra.mxu0 0.0
    %1023 = vmatprep.subr.mxu0 0.0
    %1024 = vmatpush1.msra.mxu0 0.0
    %1025 = vmatprep.subr.mxu0 0.0
    %1026 = vmatpush1.msra.mxu0 0.0
    %1027 = vmatprep.subr.mxu0 0.0
    %1028 = vmatpush1.msra.mxu0 0.0
    %1029 = vmatprep.subr.mxu0 0.0
    %1030 = vmatpush1.msra.mxu0 0.0
    %1031 = vmatprep.subr.mxu0 0.0
    %1032 = vmatpush1.msra.mxu0 0.0
    %1033 = vmatprep.subr.mxu0 0.0
    %1034 = vmatpush1.msra.mxu0 0.0
    %1035 = vmatprep.subr.mxu0 0.0
    %1036 = vmatpush1.msra.mxu0 0.0
    %1037 = vmatprep.subr.mxu0 0.0
    %1038 = vmatpush1.msra.mxu0 0.0
    %1039 = vmatprep.subr.mxu0 0.0
    %1040 = vmatpush1.msra.mxu0 0.0
    %1041 = vmatprep.subr.mxu0 0.0
    %1042 = vmatpush1.msra.mxu0 0.0
    %1043 = vmatprep.subr.mxu0 0.0
    %1044 = vmatpush1.msra.mxu0 0.0
    %1045 = vmatprep.subr.mxu0 0.0
    %1046 = vmatpush1.msra.mxu0 0.0
    %1047 = vmatprep.subr.mxu0 0.0
    %1048 = vmatpush1.msra.mxu0 0.0
    %1049 = vmatprep.subr.mxu0 0.0
    %1050 = vmatpush1.msra.mxu0 0.0
    %1051 = vmatprep.subr.mxu0 0.0
    %1052 = vmatpush1.msra.mxu0 0.0
    %1053 = vmatprep.subr.mxu0 0.0
    %1054 = vmatpush1.msra.mxu0 0.0
    %1055 = vmatprep.subr.mxu0 0.0
    %1056 = vmatpush1.msra.mxu0 0.0
    %1057 = vmatprep.subr.mxu0 0.0
    %1058 = vmatpush1.msra.mxu0 0.0
    %1059 = vmatprep.subr.mxu0 0.0
    %1060 = vmatpush1.msra.mxu0 0.0
    %1061 = vmatprep.subr.mxu0 0.0
    %1062 = vmatpush1.msra.mxu0 0.0
    %1063 = vmatprep.subr.mxu0 0.0
    %1064 = vmatpush1.msra.mxu0 0.0
    %1065 = vmatprep.subr.mxu0 0.0
    %1066 = vmatpush1.msra.mxu0 0.0
    %1067 = vmatprep.subr.mxu0 0.0
    %1068 = vmatpush1.msra.mxu0 0.0
    %1069 = vmatprep.subr.mxu0 0.0
    %1070 = vmatpush1.msra.mxu0 0.0
    %1071 = vmatprep.subr.mxu0 0.0
    %1072 = vmatpush1.msra.mxu0 0.0
    %1073 = vmatprep.subr.mxu0 0.0
    %1074 = vmatpush1.msra.mxu0 0.0
    %1075 = vmatprep.subr.mxu0 0.0
    %1076 = vmatpush1.msra.mxu0 0.0
    %1077 = vmatprep.subr.mxu0 0.0
    %1078 = vmatpush1.msra.mxu0 0.0
    %1079 = vmatprep.subr.mxu0 0.0
    %1080 = vmatpush1.msra.mxu0 0.0
    %1081 = vmatprep.subr.mxu0 0.0
    %1082 = vmatpush1.msra.mxu0 0.0
    %1083 = vmatprep.mubr.f32.mxu0 0.0
    %1084 = vmatmul.mubr.f32.gmra.mrb[0].mxu0 %v1017
    %v1085 = vpop.f32.mrb[0].mxu0
    %v1086 = vadd.f32 0.0, %v1085
    %v1087 = vpop.f32.mrb[0].mxu0
    %1088 = vdwg.mxu0
    %1089 = vrot.lane.b32.xlu0 %v154, 64
    %v1090 = vpop.permute.xlu0 %1089
    %v1093 = vsel %vm165, %v1012, 0
    %1095 = vmatprep.subr.mxu0 0.0
    %1096 = vmatpush1.msra.mxu0 %v1090
    %1097 = vmatprep.subr.mxu0 0.0
    %1098 = vmatpush1.msra.mxu0 0.0
    %1099 = vmatprep.subr.mxu0 0.0
    %1100 = vmatpush1.msra.mxu0 0.0
    %1101 = vmatprep.subr.mxu0 0.0
    %1102 = vmatpush1.msra.mxu0 0.0
    %1103 = vmatprep.subr.mxu0 0.0
    %1104 = vmatpush1.msra.mxu0 0.0
    %1105 = vmatprep.subr.mxu0 0.0
    %1106 = vmatpush1.msra.mxu0 0.0
    %1107 = vmatprep.subr.mxu0 0.0
    %1108 = vmatpush1.msra.mxu0 0.0
    %1109 = vmatprep.subr.mxu0 0.0
    %1110 = vmatpush1.msra.mxu0 0.0
    %1111 = vmatprep.subr.mxu0 0.0
    %1112 = vmatpush1.msra.mxu0 0.0
    %1113 = vmatprep.subr.mxu0 0.0
    %1114 = vmatpush1.msra.mxu0 0.0
    %1115 = vmatprep.subr.mxu0 0.0
    %1116 = vmatpush1.msra.mxu0 0.0
    %1117 = vmatprep.subr.mxu0 0.0
    %1118 = vmatpush1.msra.mxu0 0.0
    %1119 = vmatprep.subr.mxu0 0.0
    %1120 = vmatpush1.msra.mxu0 0.0
    %1121 = vmatprep.subr.mxu0 0.0
    %1122 = vmatpush1.msra.mxu0 0.0
    %1123 = vmatprep.subr.mxu0 0.0
    %1124 = vmatpush1.msra.mxu0 0.0
    %1125 = vmatprep.subr.mxu0 0.0
    %1126 = vmatpush1.msra.mxu0 0.0
    %1127 = vmatprep.subr.mxu0 0.0
    %1128 = vmatpush1.msra.mxu0 0.0
    %1129 = vmatprep.subr.mxu0 0.0
    %1130 = vmatpush1.msra.mxu0 0.0
    %1131 = vmatprep.subr.mxu0 0.0
    %1132 = vmatpush1.msra.mxu0 0.0
    %1133 = vmatprep.subr.mxu0 0.0
    %1134 = vmatpush1.msra.mxu0 0.0
    %1135 = vmatprep.subr.mxu0 0.0
    %1136 = vmatpush1.msra.mxu0 0.0
    %1137 = vmatprep.subr.mxu0 0.0
    %1138 = vmatpush1.msra.mxu0 0.0
    %1139 = vmatprep.subr.mxu0 0.0
    %1140 = vmatpush1.msra.mxu0 0.0
    %1141 = vmatprep.subr.mxu0 0.0
    %1142 = vmatpush1.msra.mxu0 0.0
    %1143 = vmatprep.subr.mxu0 0.0
    %1144 = vmatpush1.msra.mxu0 0.0
    %1145 = vmatprep.subr.mxu0 0.0
    %1146 = vmatpush1.msra.mxu0 0.0
    %1147 = vmatprep.subr.mxu0 0.0
    %1148 = vmatpush1.msra.mxu0 0.0
    %1149 = vmatprep.subr.mxu0 0.0
    %1150 = vmatpush1.msra.mxu0 0.0
    %1151 = vmatprep.subr.mxu0 0.0
    %1152 = vmatpush1.msra.mxu0 0.0
    %1153 = vmatprep.subr.mxu0 0.0
    %1154 = vmatpush1.msra.mxu0 0.0
    %1155 = vmatprep.subr.mxu0 0.0
    %1156 = vmatpush1.msra.mxu0 0.0
    %1157 = vmatprep.subr.mxu0 0.0
    %1158 = vmatpush1.msra.mxu0 0.0
    %1159 = vmatprep.mubr.f32.mxu0 0.0
    %1160 = vmatmul.mubr.f32.gmra.mrb[0].mxu0 %v1093
    %v1161 = vpop.f32.mrb[0].mxu0
    %v1162 = vadd.f32 0.0, %v1161
    %v1163 = vpop.f32.mrb[0].mxu0
    %1164 = vdwg.mxu0
    %1165 = vrot.lane.b32.xlu0 %v149, 56
    %v1166 = vpop.permute.xlu0 %1165
    %1167 = vrot.lane.b32.xlu0 %v149, 48
    %v1168 = vpop.permute.xlu0 %1167
    %v1169 = vsel %vm165, %v1166, 0
    %v1171 = vsel %vm165, %v1168, 0
    %1173 = vmatprep.subr.mxu0 0.0
    %1174 = vmatpush1.xpose.msra.mxu0 %v1171
    %1175 = vmatprep.subr.mxu0 0.0
    %1176 = vmatpush1.xpose.msra.mxu0 0.0
    %1177 = vmatprep.subr.mxu0 0.0
    %1178 = vmatpush1.xpose.msra.mxu0 0.0
    %1179 = vmatprep.subr.mxu0 0.0
    %1180 = vmatpush1.xpose.msra.mxu0 0.0
    %1181 = vmatprep.subr.mxu0 0.0
    %1182 = vmatpush1.xpose.msra.mxu0 0.0
    %1183 = vmatprep.subr.mxu0 0.0
    %1184 = vmatpush1.xpose.msra.mxu0 0.0
    %1185 = vmatprep.subr.mxu0 0.0
    %1186 = vmatpush1.xpose.msra.mxu0 0.0
    %1187 = vmatprep.subr.mxu0 0.0
    %1188 = vmatpush1.xpose.msra.mxu0 0.0
    %1189 = vmatprep.subr.mxu0 0.0
    %1190 = vmatpush1.xpose.msra.mxu0 0.0
    %1191 = vmatprep.subr.mxu0 0.0
    %1192 = vmatpush1.xpose.msra.mxu0 0.0
    %1193 = vmatprep.subr.mxu0 0.0
    %1194 = vmatpush1.xpose.msra.mxu0 0.0
    %1195 = vmatprep.subr.mxu0 0.0
    %1196 = vmatpush1.xpose.msra.mxu0 0.0
    %1197 = vmatprep.subr.mxu0 0.0
    %1198 = vmatpush1.xpose.msra.mxu0 0.0
    %1199 = vmatprep.subr.mxu0 0.0
    %1200 = vmatpush1.xpose.msra.mxu0 0.0
    %1201 = vmatprep.subr.mxu0 0.0
    %1202 = vmatpush1.xpose.msra.mxu0 0.0
    %1203 = vmatprep.subr.mxu0 0.0
    %1204 = vmatpush1.xpose.msra.mxu0 0.0
    %1205 = vmatprep.subr.mxu0 0.0
    %1206 = vmatpush1.xpose.msra.mxu0 0.0
    %1207 = vmatprep.subr.mxu0 0.0
    %1208 = vmatpush1.xpose.msra.mxu0 0.0
    %1209 = vmatprep.subr.mxu0 0.0
    %1210 = vmatpush1.xpose.msra.mxu0 0.0
    %1211 = vmatprep.subr.mxu0 0.0
    %1212 = vmatpush1.xpose.msra.mxu0 0.0
    %1213 = vmatprep.subr.mxu0 0.0
    %1214 = vmatpush1.xpose.msra.mxu0 0.0
    %1215 = vmatprep.subr.mxu0 0.0
    %1216 = vmatpush1.xpose.msra.mxu0 0.0
    %1217 = vmatprep.subr.mxu0 0.0
    %1218 = vmatpush1.xpose.msra.mxu0 0.0
    %1219 = vmatprep.subr.mxu0 0.0
    %1220 = vmatpush1.xpose.msra.mxu0 0.0
    %1221 = vmatprep.subr.mxu0 0.0
    %1222 = vmatpush1.xpose.msra.mxu0 0.0
    %1223 = vmatprep.subr.mxu0 0.0
    %1224 = vmatpush1.xpose.msra.mxu0 0.0
    %1225 = vmatprep.subr.mxu0 0.0
    %1226 = vmatpush1.xpose.msra.mxu0 0.0
    %1227 = vmatprep.subr.mxu0 0.0
    %1228 = vmatpush1.xpose.msra.mxu0 0.0
    %1229 = vmatprep.subr.mxu0 0.0
    %1230 = vmatpush1.xpose.msra.mxu0 0.0
    %1231 = vmatprep.subr.mxu0 0.0
    %1232 = vmatpush1.xpose.msra.mxu0 0.0
    %1233 = vmatprep.subr.mxu0 0.0
    %1234 = vmatpush1.xpose.msra.mxu0 0.0
    %1235 = vmatprep.subr.mxu0 0.0
    %1236 = vmatpush1.xpose.msra.mxu0 0.0
    %1237 = vmatprep.mubr.f32.mxu0 0.0
    %1238 = vmatmul.mubr.f32.gmra.mrb[0].mxu0 %v1169
    %v1239 = vpop.f32.mrb[0].mxu0
    %v1240 = vadd.f32 0.0, %v1239
    %v1241 = vpop.f32.mrb[0].mxu0
    %1242 = vdwg.mxu0
    %1243 = vrot.lane.b32.xlu0 %v154, 56
    %v1244 = vpop.permute.xlu0 %1243
    %1245 = vrot.lane.b32.xlu0 %v154, 48
    %v1246 = vpop.permute.xlu0 %1245
    %v1247 = vsel %vm165, %v1244, 0
    %v1249 = vsel %vm165, %v1246, 0
    %1251 = vmatprep.subr.mxu0 0.0
    %1252 = vmatpush1.xpose.msra.mxu0 %v1249
    %1253 = vmatprep.subr.mxu0 0.0
    %1254 = vmatpush1.xpose.msra.mxu0 0.0
    %1255 = vmatprep.subr.mxu0 0.0
    %1256 = vmatpush1.xpose.msra.mxu0 0.0
    %1257 = vmatprep.subr.mxu0 0.0
    %1258 = vmatpush1.xpose.msra.mxu0 0.0
    %1259 = vmatprep.subr.mxu0 0.0
    %1260 = vmatpush1.xpose.msra.mxu0 0.0
    %1261 = vmatprep.subr.mxu0 0.0
    %1262 = vmatpush1.xpose.msra.mxu0 0.0
    %1263 = vmatprep.subr.mxu0 0.0
    %1264 = vmatpush1.xpose.msra.mxu0 0.0
    %1265 = vmatprep.subr.mxu0 0.0
    %1266 = vmatpush1.xpose.msra.mxu0 0.0
    %1267 = vmatprep.subr.mxu0 0.0
    %1268 = vmatpush1.xpose.msra.mxu0 0.0
    %1269 = vmatprep.subr.mxu0 0.0
    %1270 = vmatpush1.xpose.msra.mxu0 0.0
    %1271 = vmatprep.subr.mxu0 0.0
    %1272 = vmatpush1.xpose.msra.mxu0 0.0
    %1273 = vmatprep.subr.mxu0 0.0
    %1274 = vmatpush1.xpose.msra.mxu0 0.0
    %1275 = vmatprep.subr.mxu0 0.0
    %1276 = vmatpush1.xpose.msra.mxu0 0.0
    %1277 = vmatprep.subr.mxu0 0.0
    %1278 = vmatpush1.xpose.msra.mxu0 0.0
    %1279 = vmatprep.subr.mxu0 0.0
    %1280 = vmatpush1.xpose.msra.mxu0 0.0
    %1281 = vmatprep.subr.mxu0 0.0
    %1282 = vmatpush1.xpose.msra.mxu0 0.0
    %1283 = vmatprep.subr.mxu0 0.0
    %1284 = vmatpush1.xpose.msra.mxu0 0.0
    %1285 = vmatprep.subr.mxu0 0.0
    %1286 = vmatpush1.xpose.msra.mxu0 0.0
    %1287 = vmatprep.subr.mxu0 0.0
    %1288 = vmatpush1.xpose.msra.mxu0 0.0
    %1289 = vmatprep.subr.mxu0 0.0
    %1290 = vmatpush1.xpose.msra.mxu0 0.0
    %1291 = vmatprep.subr.mxu0 0.0
    %1292 = vmatpush1.xpose.msra.mxu0 0.0
    %1293 = vmatprep.subr.mxu0 0.0
    %1294 = vmatpush1.xpose.msra.mxu0 0.0
    %1295 = vmatprep.subr.mxu0 0.0
    %1296 = vmatpush1.xpose.msra.mxu0 0.0
    %1297 = vmatprep.subr.mxu0 0.0
    %1298 = vmatpush1.xpose.msra.mxu0 0.0
    %1299 = vmatprep.subr.mxu0 0.0
    %1300 = vmatpush1.xpose.msra.mxu0 0.0
    %1301 = vmatprep.subr.mxu0 0.0
    %1302 = vmatpush1.xpose.msra.mxu0 0.0
    %1303 = vmatprep.subr.mxu0 0.0
    %1304 = vmatpush1.xpose.msra.mxu0 0.0
    %1305 = vmatprep.subr.mxu0 0.0
    %1306 = vmatpush1.xpose.msra.mxu0 0.0
    %1307 = vmatprep.subr.mxu0 0.0
    %1308 = vmatpush1.xpose.msra.mxu0 0.0
    %1309 = vmatprep.subr.mxu0 0.0
    %1310 = vmatpush1.xpose.msra.mxu0 0.0
    %1311 = vmatprep.subr.mxu0 0.0
    %1312 = vmatpush1.xpose.msra.mxu0 0.0
    %1313 = vmatprep.subr.mxu0 0.0
    %1314 = vmatpush1.xpose.msra.mxu0 0.0
    %1315 = vmatprep.mubr.f32.mxu0 0.0
    %1316 = vmatmul.mubr.f32.gmra.mrb[0].mxu0 %v1247
    %v1317 = vpop.f32.mrb[0].mxu0
    %v1318 = vadd.f32 0.0, %v1317
    %v1319 = vpop.f32.mrb[0].mxu0
    %1320 = vdwg.mxu0
    %v1321 = vmul.f32 %v1240, 0.35355338
    %v1322 = vmul.f32 %v1318, 0.35355338
    %v1323 = vsel %vm320, %v1321, -10000.0
    %v1324 = vsel %vm320, %v1322, -10000.0
    %v1325 = vsel %vm165, %v1323, -inf
    %1326 = vmax.xlane.f32.xlu0 %v1325
    %v1327 = vpop.xlane.xlu0 %1326
    %v1328 = vsel %vm165, %v1324, -inf
    %1329 = vmax.xlane.f32.xlu0 %v1328
    %v1330 = vpop.xlane.xlu0 %1329
    %v1331 = vsub.f32 %v1323, %v1327
    %v1332 = vsub.f32 %v1324, %v1330
    %v1333 = vmul.f32 %v1331, 1.442695
    %v1334 = vpow.pop %v1333
    %v1335 = vmul.f32 %v1332, 1.442695
    %v1336 = vpow.pop %v1335
    %v1337 = vsel %vm165, %v1334, 0.0
    %1338 = vadd.xlane.f32.xlu0 %v1337
    %v1339 = vpop.xlane.xlu0 %1338
    %v1340 = vsel %vm165, %v1336, 0.0
    %1341 = vadd.xlane.f32.xlu0 %v1340
    %v1342 = vpop.xlane.xlu0 %1341
    %v1343 = vrcp.pop %v1339
    %v1344 = vmul.f32 %v1334, %v1343
    %v1345 = vrcp.pop %v1342
    %v1346 = vmul.f32 %v1336, %v1345
    %1347 = vrot.lane.b32.xlu0 %v149, 40
    %v1348 = vpop.permute.xlu0 %1347
    %v1351 = vsel %vm165, %v1344, 0
    %1353 = vmatprep.subr.mxu0 0.0
    %1354 = vmatpush1.msra.mxu0 %v1348
    %1355 = vmatprep.subr.mxu0 0.0
    %1356 = vmatpush1.msra.mxu0 0.0
    %1357 = vmatprep.subr.mxu0 0.0
    %1358 = vmatpush1.msra.mxu0 0.0
    %1359 = vmatprep.subr.mxu0 0.0
    %1360 = vmatpush1.msra.mxu0 0.0
    %1361 = vmatprep.subr.mxu0 0.0
    %1362 = vmatpush1.msra.mxu0 0.0
    %1363 = vmatprep.subr.mxu0 0.0
    %1364 = vmatpush1.msra.mxu0 0.0
    %1365 = vmatprep.subr.mxu0 0.0
    %1366 = vmatpush1.msra.mxu0 0.0
    %1367 = vmatprep.subr.mxu0 0.0
    %1368 = vmatpush1.msra.mxu0 0.0
    %1369 = vmatprep.subr.mxu0 0.0
    %1370 = vmatpush1.msra.mxu0 0.0
    %1371 = vmatprep.subr.mxu0 0.0
    %1372 = vmatpush1.msra.mxu0 0.0
    %1373 = vmatprep.subr.mxu0 0.0
    %1374 = vmatpush1.msra.mxu0 0.0
    %1375 = vmatprep.subr.mxu0 0.0
    %1376 = vmatpush1.msra.mxu0 0.0
    %1377 = vmatprep.subr.mxu0 0.0
    %1378 = vmatpush1.msra.mxu0 0.0
    %1379 = vmatprep.subr.mxu0 0.0
    %1380 = vmatpush1.msra.mxu0 0.0
    %1381 = vmatprep.subr.mxu0 0.0
    %1382 = vmatpush1.msra.mxu0 0.0
    %1383 = vmatprep.subr.mxu0 0.0
    %1384 = vmatpush1.msra.mxu0 0.0
    %1385 = vmatprep.subr.mxu0 0.0
    %1386 = vmatpush1.msra.mxu0 0.0
    %1387 = vmatprep.subr.mxu0 0.0
    %1388 = vmatpush1.msra.mxu0 0.0
    %1389 = vmatprep.subr.mxu0 0.0
    %1390 = vmatpush1.msra.mxu0 0.0
    %1391 = vmatprep.subr.mxu0 0.0
    %1392 = vmatpush1.msra.mxu0 0.0
    %1393 = vmatprep.subr.mxu0 0.0
    %1394 = vmatpush1.msra.mxu0 0.0
    %1395 = vmatprep.subr.mxu0 0.0
    %1396 = vmatpush1.msra.mxu0 0.0
    %1397 = vmatprep.subr.mxu0 0.0
    %1398 = vmatpush1.msra.mxu0 0.0
    %1399 = vmatprep.subr.mxu0 0.0
    %1400 = vmatpush1.msra.mxu0 0.0
    %1401 = vmatprep.subr.mxu0 0.0
    %1402 = vmatpush1.msra.mxu0 0.0
    %1403 = vmatprep.subr.mxu0 0.0
    %1404 = vmatpush1.msra.mxu0 0.0
    %1405 = vmatprep.subr.mxu0 0.0
    %1406 = vmatpush1.msra.mxu0 0.0
    %1407 = vmatprep.subr.mxu0 0.0
    %1408 = vmatpush1.msra.mxu0 0.0
    %1409 = vmatprep.subr.mxu0 0.0
    %1410 = vmatpush1.msra.mxu0 0.0
    %1411 = vmatprep.subr.mxu0 0.0
    %1412 = vmatpush1.msra.mxu0 0.0
    %1413 = vmatprep.subr.mxu0 0.0
    %1414 = vmatpush1.msra.mxu0 0.0
    %1415 = vmatprep.subr.mxu0 0.0
    %1416 = vmatpush1.msra.mxu0 0.0
    %1417 = vmatprep.mubr.f32.mxu0 0.0
    %1418 = vmatmul.mubr.f32.gmra.mrb[0].mxu0 %v1351
    %v1419 = vpop.f32.mrb[0].mxu0
    %v1420 = vadd.f32 0.0, %v1419
    %v1421 = vpop.f32.mrb[0].mxu0
    %1422 = vdwg.mxu0
    %1423 = vrot.lane.b32.xlu0 %v154, 40
    %v1424 = vpop.permute.xlu0 %1423
    %v1427 = vsel %vm165, %v1346, 0
    %1429 = vmatprep.subr.mxu0 0.0
    %1430 = vmatpush1.msra.mxu0 %v1424
    %1431 = vmatprep.subr.mxu0 0.0
    %1432 = vmatpush1.msra.mxu0 0.0
    %1433 = vmatprep.subr.mxu0 0.0
    %1434 = vmatpush1.msra.mxu0 0.0
    %1435 = vmatprep.subr.mxu0 0.0
    %1436 = vmatpush1.msra.mxu0 0.0
    %1437 = vmatprep.subr.mxu0 0.0
    %1438 = vmatpush1.msra.mxu0 0.0
    %1439 = vmatprep.subr.mxu0 0.0
    %1440 = vmatpush1.msra.mxu0 0.0
    %1441 = vmatprep.subr.mxu0 0.0
    %1442 = vmatpush1.msra.mxu0 0.0
    %1443 = vmatprep.subr.mxu0 0.0
    %1444 = vmatpush1.msra.mxu0 0.0
    %1445 = vmatprep.subr.mxu0 0.0
    %1446 = vmatpush1.msra.mxu0 0.0
    %1447 = vmatprep.subr.mxu0 0.0
    %1448 = vmatpush1.msra.mxu0 0.0
    %1449 = vmatprep.subr.mxu0 0.0
    %1450 = vmatpush1.msra.mxu0 0.0
    %1451 = vmatprep.subr.mxu0 0.0
    %1452 = vmatpush1.msra.mxu0 0.0
    %1453 = vmatprep.subr.mxu0 0.0
    %1454 = vmatpush1.msra.mxu0 0.0
    %1455 = vmatprep.subr.mxu0 0.0
    %1456 = vmatpush1.msra.mxu0 0.0
    %1457 = vmatprep.subr.mxu0 0.0
    %1458 = vmatpush1.msra.mxu0 0.0
    %1459 = vmatprep.subr.mxu0 0.0
    %1460 = vmatpush1.msra.mxu0 0.0
    %1461 = vmatprep.subr.mxu0 0.0
    %1462 = vmatpush1.msra.mxu0 0.0
    %1463 = vmatprep.subr.mxu0 0.0
    %1464 = vmatpush1.msra.mxu0 0.0
    %1465 = vmatprep.subr.mxu0 0.0
    %1466 = vmatpush1.msra.mxu0 0.0
    %1467 = vmatprep.subr.mxu0 0.0
    %1468 = vmatpush1.msra.mxu0 0.0
    %1469 = vmatprep.subr.mxu0 0.0
    %1470 = vmatpush1.msra.mxu0 0.0
    %1471 = vmatprep.subr.mxu0 0.0
    %1472 = vmatpush1.msra.mxu0 0.0
    %1473 = vmatprep.subr.mxu0 0.0
    %1474 = vmatpush1.msra.mxu0 0.0
    %1475 = vmatprep.subr.mxu0 0.0
    %1476 = vmatpush1.msra.mxu0 0.0
    %1477 = vmatprep.subr.mxu0 0.0
    %1478 = vmatpush1.msra.mxu0 0.0
    %1479 = vmatprep.subr.mxu0 0.0
    %1480 = vmatpush1.msra.mxu0 0.0
    %1481 = vmatprep.subr.mxu0 0.0
    %1482 = vmatpush1.msra.mxu0 0.0
    %1483 = vmatprep.subr.mxu0 0.0
    %1484 = vmatpush1.msra.mxu0 0.0
    %1485 = vmatprep.subr.mxu0 0.0
    %1486 = vmatpush1.msra.mxu0 0.0
    %1487 = vmatprep.subr.mxu0 0.0
    %1488 = vmatpush1.msra.mxu0 0.0
    %1489 = vmatprep.subr.mxu0 0.0
    %1490 = vmatpush1.msra.mxu0 0.0
    %1491 = vmatprep.subr.mxu0 0.0
    %1492 = vmatpush1.msra.mxu0 0.0
    %1493 = vmatprep.mubr.f32.mxu0 0.0
    %1494 = vmatmul.mubr.f32.gmra.mrb[0].mxu0 %v1427
    %v1495 = vpop.f32.mrb[0].mxu0
    %v1496 = vadd.f32 0.0, %v1495
    %v1497 = vpop.f32.mrb[0].mxu0
    %1498 = vdwg.mxu0
    %1501 = vrot.lane.b32.xlu0 %v752, 8
    %v1502 = vpop.permute.xlu0 %1501
    %1503 = vrot.lane.b32.xlu0 %v828, 8
    %v1504 = vpop.permute.xlu0 %1503
    %1509 = vrot.lane.b32.xlu0 %v1086, 16
    %v1510 = vpop.permute.xlu0 %1509
    %1511 = vrot.lane.b32.xlu0 %v1162, 16
    %v1512 = vpop.permute.xlu0 %1511
    %1517 = vrot.lane.b32.xlu0 %v1420, 24
    %v1518 = vpop.permute.xlu0 %1517
    %1519 = vrot.lane.b32.xlu0 %v1496, 24
    %v1520 = vpop.permute.xlu0 %1519
    %v1523 = vsel %vm165, %v418, %v1502
    %v1524 = vsel %vm165, %v494, %v1504
    %vm1525 = vcmask 130048
    %v1526 = vsel %vm1525, %v1523, %v1510
    %v1527 = vsel %vm1525, %v1524, %v1512
    %vm1528 = vcmask 195584
    %v1529 = vsel %vm1528, %v1526, %v1518
    %v1530 = vsel %vm1528, %v1527, %v1520
    %v1531 = vld [vmem:[#allocation7] sm:$0xff]
    %v1532 = vld [vmem:[#allocation7 + $0x8] sm:$0xff]
    %v1533 = vld [vmem:[#allocation7 + $0x10] sm:$0xff]
    %v1534 = vld [vmem:[#allocation7 + $0x18] sm:$0xff]
    %v1535 = vld [vmem:[%s4] sm:$0x1]
    %v1537 = vlaneseq
    %v1538 = vshrl.u32 %v1537, 7
    %v1539 = vsub.s32 0, %v1538
    %v1540 = vrot.slane %v1535, %v1539
    %v1543 = vsel %vm75, %v1529, 0
    %v1546 = vsel %vm75, %v1530, 0
    %1548 = vmatprep.subr.mxu0 0.0
    %1549 = vmatpush1.msra.mxu0 %v1531
    %1550 = vmatprep.subr.mxu0 0.0
    %1551 = vmatpush1.msra.mxu0 %v1532
    %1552 = vmatprep.subr.mxu0 0.0
    %1553 = vmatpush1.msra.mxu0 %v1533
    %1554 = vmatprep.subr.mxu0 0.0
    %1555 = vmatpush1.msra.mxu0 %v1534
    %1556 = vmatprep.subr.mxu0 0.0
    %1557 = vmatpush1.msra.mxu0 0.0
    %1558 = vmatprep.subr.mxu0 0.0
    %1559 = vmatpush1.msra.mxu0 0.0
    %1560 = vmatprep.subr.mxu0 0.0
    %1561 = vmatpush1.msra.mxu0 0.0
    %1562 = vmatprep.subr.mxu0 0.0
    %1563 = vmatpush1.msra.mxu0 0.0
    %1564 = vmatprep.subr.mxu0 0.0
    %1565 = vmatpush1.msra.mxu0 0.0
    %1566 = vmatprep.subr.mxu0 0.0
    %1567 = vmatpush1.msra.mxu0 0.0
    %1568 = vmatprep.subr.mxu0 0.0
    %1569 = vmatpush1.msra.mxu0 0.0
    %1570 = vmatprep.subr.mxu0 0.0
    %1571 = vmatpush1.msra.mxu0 0.0
    %1572 = vmatprep.subr.mxu0 0.0
    %1573 = vmatpush1.msra.mxu0 0.0
    %1574 = vmatprep.subr.mxu0 0.0
    %1575 = vmatpush1.msra.mxu0 0.0
    %1576 = vmatprep.subr.mxu0 0.0
    %1577 = vmatpush1.msra.mxu0 0.0
    %1578 = vmatprep.subr.mxu0 0.0
    %1579 = vmatpush1.msra.mxu0 0.0
    %1580 = vmatprep.subr.mxu0 0.0
    %1581 = vmatpush1.msra.mxu0 0.0
    %1582 = vmatprep.subr.mxu0 0.0
    %1583 = vmatpush1.msra.mxu0 0.0
    %1584 = vmatprep.subr.mxu0 0.0
    %1585 = vmatpush1.msra.mxu0 0.0
    %1586 = vmatprep.subr.mxu0 0.0
    %1587 = vmatpush1.msra.mxu0 0.0
    %1588 = vmatprep.subr.mxu0 0.0
    %1589 = vmatpush1.msra.mxu0 0.0
    %1590 = vmatprep.subr.mxu0 0.0
    %1591 = vmatpush1.msra.mxu0 0.0
    %1592 = vmatprep.subr.mxu0 0.0
    %1593 = vmatpush1.msra.mxu0 0.0
    %1594 = vmatprep.subr.mxu0 0.0
    %1595 = vmatpush1.msra.mxu0 0.0
    %1596 = vmatprep.subr.mxu0 0.0
    %1597 = vmatpush1.msra.mxu0 0.0
    %1598 = vmatprep.subr.mxu0 0.0
    %1599 = vmatpush1.msra.mxu0 0.0
    %1600 = vmatprep.subr.mxu0 0.0
    %1601 = vmatpush1.msra.mxu0 0.0
    %1602 = vmatprep.subr.mxu0 0.0
    %1603 = vmatpush1.msra.mxu0 0.0
    %1604 = vmatprep.subr.mxu0 0.0
    %1605 = vmatpush1.msra.mxu0 0.0
    %1606 = vmatprep.subr.mxu0 0.0
    %1607 = vmatpush1.msra.mxu0 0.0
    %1608 = vmatprep.subr.mxu0 0.0
    %1609 = vmatpush1.msra.mxu0 0.0
    %1610 = vmatprep.subr.mxu0 0.0
    %1611 = vmatpush1.msra.mxu0 0.0
    %1612 = vmatprep.mubr.f32.mxu0 0.0
    %1613 = vmatmul.mubr.f32.gmra.mrb[0].mxu0 %v1543
    %v1614 = vpop.f32.mrb[0].mxu0
    %v1615 = vadd.f32 %v1540, %v1614
    %v1616 = vpop.f32.mrb[0].mxu0
    %1617 = vmatprep.mubr.f32.mxu0 0.0
    %1618 = vmatmul.mubr.f32.gmra.mrb[0].mxu0 %v1546
    %v1619 = vpop.f32.mrb[0].mxu0
    %v1620 = vadd.f32 %v1540, %v1619
    %v1621 = vpop.f32.mrb[0].mxu0
    %1622 = vdwg.mxu0
    %1623 = vst.msk [vmem:[#allocation8] sm:$0xff] %vm75, %v1615
    %1624 = vst.msk [vmem:[#allocation8 + $0x8] sm:$0xff] %vm75, %v1620
    // Predicated region
    $region34: #{tpu_custom_call.1} parent=1 // pred_check
      _
    $region35: #{tpu_custom_call.1} parent=1 // pred_check_branch
      %1626 = sbr.rel (0) target = $region37
    $region36: #{tpu_custom_call.1} parent=1 // pred_region
      %s1628 = ssub.s32 256, 256
      %1629 = vsyncadd [#allocation4], %s1628
      %s1630 = sshll.u32 [#allocation8], 4
      %s1631 = int_to_ptr.vmem [resolvable:$true] %s1630
      %1636 = dma.vmem_to_hbm [thread:$0]  %s1631, 256, %s5, [#allocation4], 128, 128, 8
    $region37: #{tpu_custom_call.1} parent=1 // pred_fallthru
      _
    // Predicated region
    $region38: #{tpu_custom_call.1} parent=1 // pred_check
      _
    $region39: #{tpu_custom_call.1} parent=1 // pred_check_branch
      %1638 = sbr.rel (0) target = $region41
    $region40: #{tpu_custom_call.1} parent=1 // pred_region
      %1639 = dma.done [#allocation4], 256
    $region41: #{tpu_custom_call.1} parent=1 // pred_fallthru
      _
    %1640 = vsyncpa [#allocation3], 1
    %1641 = vsyncpa [#allocation6], 1
    %1642 = vsyncpa [#allocation4], 1

</llo_original>
